<compile_context>
chip_gen: v7x
topology: tpu7x:2x2x1
jax: 0.10.0
libtpu: 0.0.40
codegen_flags: <defaults>
</compile_context>

<pallas_src>
import functools

import jax
import jax.numpy as jnp
from jax.experimental import pallas as pl
from jax.experimental.pallas import tpu as pltpu

_VMEM = pl.BlockSpec(memory_space=pltpu.MemorySpace.VMEM)


# ---------------------------------------------------------------------------
# Fused forward kernel
# ---------------------------------------------------------------------------
def _dagcn_fused_kernel(
    x1p_ref, x2p_ref,                 # packed features  [N, 2*nfeat]
    adj1_ref, adj2_ref,               # dense adjacency  [N, N]
    w1p_ref, b1p_ref,                 # block-diag layer-1 W [2F,2H], bias [1,2H]
    gc2w_ref, gc2b_ref,               # layer-2 W [2H,C], bias [1,C]
    fc1w1_ref, fc1b1_ref, fc1w2_ref, fc1b2_ref,   # auto_weight1 linears
    fcw1_ref, fcb1_ref, fcw2_ref, fcb2_ref,       # auto_weight linears
    out_ref, p1_ref, p2_ref,
):
    adj1 = adj1_ref[...]
    adj2 = adj2_ref[...]
    w1p = w1p_ref[...]
    b1p = b1p_ref[...]

    # ---- layer 1 (both GraphConvolutions of a branch in one matmul pair) ----
    s1 = jnp.dot(x1p_ref[...], w1p, preferred_element_type=jnp.float32)
    s2 = jnp.dot(x2p_ref[...], w1p, preferred_element_type=jnp.float32)
    h1 = jnp.maximum(jnp.dot(adj1, s1, preferred_element_type=jnp.float32) + b1p, 0.0)
    h2 = jnp.maximum(jnp.dot(adj2, s2, preferred_element_type=jnp.float32) + b1p, 0.0)

    # ---- gate 1: auto_weight1 + weighted combine (fused epilogue) ----
    lam1 = jax.nn.sigmoid(
        jnp.sum(h1 * fc1w1_ref[...], axis=-1, keepdims=True) + fc1b1_ref[0, 0]
    )
    lam2 = jax.nn.sigmoid(
        jnp.sum(h2 * fc1w2_ref[...], axis=-1, keepdims=True) + fc1b2_ref[0, 0]
    )
    inv1 = pl.reciprocal(jnp.maximum(lam1 + lam2, 1e-12), approx=True)
    x = (lam1 * h1 + lam2 * h2) * inv1

    # ---- layer 2: shared support, two adjacency products ----
    sup2 = jnp.dot(x, gc2w_ref[...], preferred_element_type=jnp.float32)
    gc2b = gc2b_ref[...]
    p1 = jnp.dot(adj1, sup2, preferred_element_type=jnp.float32) + gc2b
    p2 = jnp.dot(adj2, sup2, preferred_element_type=jnp.float32) + gc2b

    # ---- gate 2: auto_weight + weighted combine ----
    mu1 = jax.nn.sigmoid(
        jnp.sum(p1 * fcw1_ref[...], axis=-1, keepdims=True) + fcb1_ref[0, 0]
    )
    mu2 = jax.nn.sigmoid(
        jnp.sum(p2 * fcw2_ref[...], axis=-1, keepdims=True) + fcb2_ref[0, 0]
    )
    inv2 = pl.reciprocal(jnp.maximum(mu1 + mu2, 1e-12), approx=True)

    p1_ref[...] = p1
    p2_ref[...] = p2
    out_ref[...] = (mu1 * p1 + mu2 * p2) * inv2


# ---------------------------------------------------------------------------
# Python wrapper: weight packing + single pallas_call
# ---------------------------------------------------------------------------
@jax.jit
def dagcn_forward(params, x_list1, x_list2, adj1, adj2):
    n, nfeat = x_list1[0].shape
    nhid = params["gcn1_0_w"].shape[1]
    nclass = params["gc2_w"].shape[1]

    # One-time packing (tiny; done in the XLA wrapper, not per kernel step):
    #   features: [x_k0 | x_k1]  -> [N, 2*nfeat]
    #   weights : block-diag(W0, W1) -> [2*nfeat, 2*nhid]
    x1p = jnp.concatenate(x_list1, axis=-1)
    x2p = jnp.concatenate(x_list2, axis=-1)
    w_blk = jnp.zeros((2 * nfeat, 2 * nhid), jnp.float32)
    w_blk = w_blk.at[:nfeat, :nhid].set(params["gcn1_0_w"])
    w_blk = w_blk.at[nfeat:, nhid:].set(params["gcn1_1_w"])
    b1p = jnp.concatenate([params["gcn1_0_b"], params["gcn1_1_b"]]).reshape(1, -1)

    out_shape = (
        jax.ShapeDtypeStruct((n, nclass), jnp.float32),  # out
        jax.ShapeDtypeStruct((n, nclass), jnp.float32),  # gnn_prop1
        jax.ShapeDtypeStruct((n, nclass), jnp.float32),  # gnn_prop2
    )
    return pl.pallas_call(
        _dagcn_fused_kernel,
        out_shape=out_shape,
        in_specs=[_VMEM] * 16,
        out_specs=(_VMEM, _VMEM, _VMEM),
    )(
        x1p, x2p, adj1, adj2,
        w_blk, b1p,
        params["gc2_w"], params["gc2_b"].reshape(1, -1),
        params["fc1_weight1_w"].reshape(1, -1), params["fc1_weight1_b"].reshape(1, 1),
        params["fc1_weight2_w"].reshape(1, -1), params["fc1_weight2_b"].reshape(1, 1),
        params["fc_weight1_w"].reshape(1, -1), params["fc_weight1_b"].reshape(1, 1),
        params["fc_weight2_w"].reshape(1, -1), params["fc_weight2_b"].reshape(1, 1),
    )


# ---------------------------------------------------------------------------
# Pure-JAX reference (for a sanity check only)
# ---------------------------------------------------------------------------
def dagcn_reference(params, x_list1, x_list2, adj1, adj2):
    def gcn(x, adj, w, b, relu):
        o = adj @ (x @ w) + b.reshape(1, -1)
        return jnp.maximum(o, 0.0) if relu else o

    def combine(a, b, w1, b1, w2, b2):
        l1 = jax.nn.sigmoid(a @ w1.reshape(-1, 1) + b1)
        l2 = jax.nn.sigmoid(b @ w2.reshape(-1, 1) + b2)
        d = jnp.maximum(l1 + l2, 1e-12)
        return (l1 * a + l2 * b) / d

    h1 = jnp.concatenate(
        [gcn(x_list1[k], adj1, params[f"gcn1_{k}_w"], params[f"gcn1_{k}_b"], True)
         for k in range(2)], axis=-1)
    h2 = jnp.concatenate(
        [gcn(x_list2[k], adj2, params[f"gcn1_{k}_w"], params[f"gcn1_{k}_b"], True)
         for k in range(2)], axis=-1)
    x = combine(h1, h2, params["fc1_weight1_w"], params["fc1_weight1_b"],
                params["fc1_weight2_w"], params["fc1_weight2_b"])
    p1 = gcn(x, adj1, params["gc2_w"], params["gc2_b"], False)
    p2 = gcn(x, adj2, params["gc2_w"], params["gc2_b"], False)
    out = combine(p1, p2, params["fc_weight1_w"], params["fc_weight1_b"],
                  params["fc_weight2_w"], params["fc_weight2_b"])
    return out, p1, p2


# ---------------------------------------------------------------------------
# Deterministic synthetic params / inputs
# ---------------------------------------------------------------------------
def make_params(key, nfeat, nhid, nclass, concat=2):
    params = {}
    keys = jax.random.split(key, 16)
    ki = iter(keys)

    def unif(k, shape, scale=0.1):
        return jax.random.uniform(k, shape, jnp.float32, -scale, scale)

    for k in range(concat):
        params[f"gcn1_{k}_w"] = unif(next(ki), (nfeat, nhid))
        params[f"gcn1_{k}_b"] = unif(next(ki), (nhid,))
    params["gc2_w"] = unif(next(ki), (concat * nhid, nclass))
    params["gc2_b"] = unif(next(ki), (nclass,))
    # nn.Linear(in, 1): weight [1, in], bias [1]
    params["fc1_weight1_w"] = unif(next(ki), (1, concat * nhid))
    params["fc1_weight1_b"] = unif(next(ki), (1,))
    params["fc1_weight2_w"] = unif(next(ki), (1, concat * nhid))
    params["fc1_weight2_b"] = unif(next(ki), (1,))
    params["fc_weight1_w"] = unif(next(ki), (1, nclass))
    params["fc_weight1_b"] = unif(next(ki), (1,))
    params["fc_weight2_w"] = unif(next(ki), (1, nclass))
    params["fc_weight2_b"] = unif(next(ki), (1,))
    return params


def make_adj(key, n):
    a = jax.random.uniform(key, (n, n), jnp.float32, 0.0, 1.0)
    a = (a > 0.8).astype(jnp.float32) + jnp.eye(n, dtype=jnp.float32)
    deg = jnp.sum(a, axis=-1, keepdims=True)     # D^-1 A row-normalization
    return a / jnp.maximum(deg, 1.0)


if __name__ == "__main__":
    N, NFEAT, NHID, NCLASS = 64, 32, 32, 16

    root = jax.random.PRNGKey(0)
    k_params, k_a1, k_a2, k_x = jax.random.split(root, 4)
    params = make_params(k_params, NFEAT, NHID, NCLASS)

    adj1 = make_adj(k_a1, N)
    adj2 = make_adj(k_a2, N)

    xk = jax.random.split(k_x, 4)
    x_list1 = [jax.random.normal(xk[i], (N, NFEAT), jnp.float32) for i in range(2)]
    x_list2 = [jax.random.normal(xk[2 + i], (N, NFEAT), jnp.float32) for i in range(2)]

    out, p1, p2 = dagcn_forward(params, x_list1, x_list2, adj1, adj2)
    jax.block_until_ready((out, p1, p2))

    assert out.shape == (N, NCLASS) and p1.shape == (N, NCLASS) and p2.shape == (N, NCLASS)
    assert jnp.all(jnp.isfinite(out)) and jnp.all(jnp.isfinite(p1)) and jnp.all(jnp.isfinite(p2))

    # Loose numerical check against a pure-JAX reference (approx reciprocal
    # in the kernel introduces ~1e-3 relative error at most).
    r_out, r_p1, r_p2 = dagcn_reference(params, x_list1, x_list2, adj1, adj2)
    assert jnp.allclose(p1, r_p1, rtol=5e-2, atol=5e-3)
    assert jnp.allclose(p2, r_p2, rtol=5e-2, atol=5e-3)
    assert jnp.allclose(out, r_out, rtol=5e-2, atol=5e-3)

    print("KERNEL_OK")
</pallas_src>

<mosaic_0001>
module attributes {stable_mosaic.version = 11 : i64} {
  func.func @_dagcn_fused_kernel(%arg0: memref<64x64xf32, #tpu.memory_space<vmem>>, %arg1: memref<64x64xf32, #tpu.memory_space<vmem>>, %arg2: memref<64x64xf32, #tpu.memory_space<vmem>>, %arg3: memref<64x64xf32, #tpu.memory_space<vmem>>, %arg4: memref<64x64xf32, #tpu.memory_space<vmem>>, %arg5: memref<1x64xf32, #tpu.memory_space<vmem>>, %arg6: memref<64x16xf32, #tpu.memory_space<vmem>>, %arg7: memref<1x16xf32, #tpu.memory_space<vmem>>, %arg8: memref<1x64xf32, #tpu.memory_space<vmem>>, %arg9: memref<1x1xf32, #tpu.memory_space<vmem>>, %arg10: memref<1x64xf32, #tpu.memory_space<vmem>>, %arg11: memref<1x1xf32, #tpu.memory_space<vmem>>, %arg12: memref<1x16xf32, #tpu.memory_space<vmem>>, %arg13: memref<1x1xf32, #tpu.memory_space<vmem>>, %arg14: memref<1x16xf32, #tpu.memory_space<vmem>>, %arg15: memref<1x1xf32, #tpu.memory_space<vmem>>, %arg16: memref<64x16xf32, #tpu.memory_space<vmem>>, %arg17: memref<64x16xf32, #tpu.memory_space<vmem>>, %arg18: memref<64x16xf32, #tpu.memory_space<vmem>>) attributes {dimension_semantics = [], scalar_prefetch = 0 : i64, scratch_operands = 0 : i64, tpu.core_type = #tpu.core_type<tc>} {
    %c0 = arith.constant 0 : index
    %c0_0 = arith.constant 0 : index
    %0 = vector.load %arg2[%c0, %c0_0] : memref<64x64xf32, #tpu.memory_space<vmem>>, vector<64x64xf32>
    %c0_1 = arith.constant 0 : index
    %c0_2 = arith.constant 0 : index
    %1 = vector.load %arg3[%c0_1, %c0_2] : memref<64x64xf32, #tpu.memory_space<vmem>>, vector<64x64xf32>
    %c0_3 = arith.constant 0 : index
    %c0_4 = arith.constant 0 : index
    %2 = vector.load %arg4[%c0_3, %c0_4] : memref<64x64xf32, #tpu.memory_space<vmem>>, vector<64x64xf32>
    %c0_5 = arith.constant 0 : index
    %c0_6 = arith.constant 0 : index
    %3 = vector.load %arg5[%c0_5, %c0_6] : memref<1x64xf32, #tpu.memory_space<vmem>>, vector<1x64xf32>
    %c0_7 = arith.constant 0 : index
    %c0_8 = arith.constant 0 : index
    %4 = vector.load %arg0[%c0_7, %c0_8] : memref<64x64xf32, #tpu.memory_space<vmem>>, vector<64x64xf32>
    %cst = arith.constant dense<0.000000e+00> : vector<64x64xf32>
    %5 = tpu.matmul %4, %2, %cst {dimension_numbers = #tpu.dot_dimension_numbers<[1], [0], [0], [1], [0, 0, 1, 1], [], []>} : vector<64x64xf32>, vector<64x64xf32>, vector<64x64xf32> -> vector<64x64xf32>
    %c0_9 = arith.constant 0 : index
    %c0_10 = arith.constant 0 : index
    %6 = vector.load %arg1[%c0_9, %c0_10] : memref<64x64xf32, #tpu.memory_space<vmem>>, vector<64x64xf32>
    %cst_11 = arith.constant dense<0.000000e+00> : vector<64x64xf32>
    %7 = tpu.matmul %6, %2, %cst_11 {dimension_numbers = #tpu.dot_dimension_numbers<[1], [0], [0], [1], [0, 0, 1, 1], [], []>} : vector<64x64xf32>, vector<64x64xf32>, vector<64x64xf32> -> vector<64x64xf32>
    %cst_12 = arith.constant dense<0.000000e+00> : vector<64x64xf32>
    %8 = tpu.matmul %0, %5, %cst_12 {dimension_numbers = #tpu.dot_dimension_numbers<[1], [0], [0], [1], [0, 0, 1, 1], [], []>} : vector<64x64xf32>, vector<64x64xf32>, vector<64x64xf32> -> vector<64x64xf32>
    %9 = vector.broadcast %3 : vector<1x64xf32> to vector<64x64xf32>
    %10 = arith.addf %8, %9 : vector<64x64xf32>
    %cst_13 = arith.constant 0.000000e+00 : f32
    %11 = vector.broadcast %cst_13 : f32 to vector<64x64xf32>
    %12 = arith.maximumf %10, %11 : vector<64x64xf32>
    %cst_14 = arith.constant dense<0.000000e+00> : vector<64x64xf32>
    %13 = tpu.matmul %1, %7, %cst_14 {dimension_numbers = #tpu.dot_dimension_numbers<[1], [0], [0], [1], [0, 0, 1, 1], [], []>} : vector<64x64xf32>, vector<64x64xf32>, vector<64x64xf32> -> vector<64x64xf32>
    %14 = vector.broadcast %3 : vector<1x64xf32> to vector<64x64xf32>
    %15 = arith.addf %13, %14 : vector<64x64xf32>
    %cst_15 = arith.constant 0.000000e+00 : f32
    %16 = vector.broadcast %cst_15 : f32 to vector<64x64xf32>
    %17 = arith.maximumf %15, %16 : vector<64x64xf32>
    %c0_16 = arith.constant 0 : index
    %c0_17 = arith.constant 0 : index
    %18 = vector.load %arg8[%c0_16, %c0_17] : memref<1x64xf32, #tpu.memory_space<vmem>>, vector<1x64xf32>
    %19 = vector.broadcast %18 : vector<1x64xf32> to vector<64x64xf32>
    %20 = arith.mulf %12, %19 : vector<64x64xf32>
    %cst_18 = arith.constant dense<0.000000e+00> : vector<64xf32>
    %21 = vector.multi_reduction <add>, %20, %cst_18 [1] : vector<64x64xf32> to vector<64xf32>
    %22 = vector.shape_cast %21 : vector<64xf32> to vector<64x1xf32>
    %c0_19 = arith.constant 0 : index
    %c0_20 = arith.constant 0 : index
    %23 = vector.load %arg9[%c0_19, %c0_20] : memref<1x1xf32, #tpu.memory_space<vmem>>, vector<1x1xf32>
    %24 = vector.extract %23[0, 0] : f32 from vector<1x1xf32>
    %25 = vector.broadcast %24 : f32 to vector<64x1xf32>
    %26 = arith.addf %22, %25 : vector<64x1xf32>
    %27 = arith.negf %26 : vector<64x1xf32>
    %28 = math.exp %27 : vector<64x1xf32>
    %cst_21 = arith.constant 1.000000e+00 : f32
    %29 = vector.broadcast %cst_21 : f32 to vector<64x1xf32>
    %30 = arith.addf %29, %28 : vector<64x1xf32>
    %31 = arith.divf %29, %30 : vector<64x1xf32>
    %c0_22 = arith.constant 0 : index
    %c0_23 = arith.constant 0 : index
    %32 = vector.load %arg10[%c0_22, %c0_23] : memref<1x64xf32, #tpu.memory_space<vmem>>, vector<1x64xf32>
    %33 = vector.broadcast %32 : vector<1x64xf32> to vector<64x64xf32>
    %34 = arith.mulf %17, %33 : vector<64x64xf32>
    %cst_24 = arith.constant dense<0.000000e+00> : vector<64xf32>
    %35 = vector.multi_reduction <add>, %34, %cst_24 [1] : vector<64x64xf32> to vector<64xf32>
    %36 = vector.shape_cast %35 : vector<64xf32> to vector<64x1xf32>
    %c0_25 = arith.constant 0 : index
    %c0_26 = arith.constant 0 : index
    %37 = vector.load %arg11[%c0_25, %c0_26] : memref<1x1xf32, #tpu.memory_space<vmem>>, vector<1x1xf32>
    %38 = vector.extract %37[0, 0] : f32 from vector<1x1xf32>
    %39 = vector.broadcast %38 : f32 to vector<64x1xf32>
    %40 = arith.addf %36, %39 : vector<64x1xf32>
    %41 = arith.negf %40 : vector<64x1xf32>
    %42 = math.exp %41 : vector<64x1xf32>
    %cst_27 = arith.constant 1.000000e+00 : f32
    %43 = vector.broadcast %cst_27 : f32 to vector<64x1xf32>
    %44 = arith.addf %43, %42 : vector<64x1xf32>
    %45 = arith.divf %43, %44 : vector<64x1xf32>
    %46 = arith.addf %31, %45 : vector<64x1xf32>
    %cst_28 = arith.constant 9.99999996E-13 : f32
    %47 = vector.broadcast %cst_28 : f32 to vector<64x1xf32>
    %48 = arith.maximumf %46, %47 : vector<64x1xf32>
    %49 = tpu.reciprocal %48 {approx = true} : vector<64x1xf32> -> vector<64x1xf32>
    %50 = vector.broadcast %31 : vector<64x1xf32> to vector<64x64xf32>
    %51 = arith.mulf %50, %12 : vector<64x64xf32>
    %52 = vector.broadcast %45 : vector<64x1xf32> to vector<64x64xf32>
    %53 = arith.mulf %52, %17 : vector<64x64xf32>
    %54 = arith.addf %51, %53 : vector<64x64xf32>
    %55 = vector.broadcast %49 : vector<64x1xf32> to vector<64x64xf32>
    %56 = arith.mulf %54, %55 : vector<64x64xf32>
    %c0_29 = arith.constant 0 : index
    %c0_30 = arith.constant 0 : index
    %57 = vector.load %arg6[%c0_29, %c0_30] : memref<64x16xf32, #tpu.memory_space<vmem>>, vector<64x16xf32>
    %cst_31 = arith.constant dense<0.000000e+00> : vector<64x16xf32>
    %58 = tpu.matmul %56, %57, %cst_31 {dimension_numbers = #tpu.dot_dimension_numbers<[1], [0], [0], [1], [0, 0, 1, 1], [], []>} : vector<64x64xf32>, vector<64x16xf32>, vector<64x16xf32> -> vector<64x16xf32>
    %c0_32 = arith.constant 0 : index
    %c0_33 = arith.constant 0 : index
    %59 = vector.load %arg7[%c0_32, %c0_33] : memref<1x16xf32, #tpu.memory_space<vmem>>, vector<1x16xf32>
    %cst_34 = arith.constant dense<0.000000e+00> : vector<64x16xf32>
    %60 = tpu.matmul %0, %58, %cst_34 {dimension_numbers = #tpu.dot_dimension_numbers<[1], [0], [0], [1], [0, 0, 1, 1], [], []>} : vector<64x64xf32>, vector<64x16xf32>, vector<64x16xf32> -> vector<64x16xf32>
    %61 = vector.broadcast %59 : vector<1x16xf32> to vector<64x16xf32>
    %62 = arith.addf %60, %61 : vector<64x16xf32>
    %cst_35 = arith.constant dense<0.000000e+00> : vector<64x16xf32>
    %63 = tpu.matmul %1, %58, %cst_35 {dimension_numbers = #tpu.dot_dimension_numbers<[1], [0], [0], [1], [0, 0, 1, 1], [], []>} : vector<64x64xf32>, vector<64x16xf32>, vector<64x16xf32> -> vector<64x16xf32>
    %64 = vector.broadcast %59 : vector<1x16xf32> to vector<64x16xf32>
    %65 = arith.addf %63, %64 : vector<64x16xf32>
    %c0_36 = arith.constant 0 : index
    %c0_37 = arith.constant 0 : index
    %66 = vector.load %arg12[%c0_36, %c0_37] : memref<1x16xf32, #tpu.memory_space<vmem>>, vector<1x16xf32>
    %67 = vector.broadcast %66 : vector<1x16xf32> to vector<64x16xf32>
    %68 = arith.mulf %62, %67 : vector<64x16xf32>
    %cst_38 = arith.constant dense<0.000000e+00> : vector<64xf32>
    %69 = vector.multi_reduction <add>, %68, %cst_38 [1] : vector<64x16xf32> to vector<64xf32>
    %70 = vector.shape_cast %69 : vector<64xf32> to vector<64x1xf32>
    %c0_39 = arith.constant 0 : index
    %c0_40 = arith.constant 0 : index
    %71 = vector.load %arg13[%c0_39, %c0_40] : memref<1x1xf32, #tpu.memory_space<vmem>>, vector<1x1xf32>
    %72 = vector.extract %71[0, 0] : f32 from vector<1x1xf32>
    %73 = vector.broadcast %72 : f32 to vector<64x1xf32>
    %74 = arith.addf %70, %73 : vector<64x1xf32>
    %75 = arith.negf %74 : vector<64x1xf32>
    %76 = math.exp %75 : vector<64x1xf32>
    %cst_41 = arith.constant 1.000000e+00 : f32
    %77 = vector.broadcast %cst_41 : f32 to vector<64x1xf32>
    %78 = arith.addf %77, %76 : vector<64x1xf32>
    %79 = arith.divf %77, %78 : vector<64x1xf32>
    %c0_42 = arith.constant 0 : index
    %c0_43 = arith.constant 0 : index
    %80 = vector.load %arg14[%c0_42, %c0_43] : memref<1x16xf32, #tpu.memory_space<vmem>>, vector<1x16xf32>
    %81 = vector.broadcast %80 : vector<1x16xf32> to vector<64x16xf32>
    %82 = arith.mulf %65, %81 : vector<64x16xf32>
    %cst_44 = arith.constant dense<0.000000e+00> : vector<64xf32>
    %83 = vector.multi_reduction <add>, %82, %cst_44 [1] : vector<64x16xf32> to vector<64xf32>
    %84 = vector.shape_cast %83 : vector<64xf32> to vector<64x1xf32>
    %c0_45 = arith.constant 0 : index
    %c0_46 = arith.constant 0 : index
    %85 = vector.load %arg15[%c0_45, %c0_46] : memref<1x1xf32, #tpu.memory_space<vmem>>, vector<1x1xf32>
    %86 = vector.extract %85[0, 0] : f32 from vector<1x1xf32>
    %87 = vector.broadcast %86 : f32 to vector<64x1xf32>
    %88 = arith.addf %84, %87 : vector<64x1xf32>
    %89 = arith.negf %88 : vector<64x1xf32>
    %90 = math.exp %89 : vector<64x1xf32>
    %cst_47 = arith.constant 1.000000e+00 : f32
    %91 = vector.broadcast %cst_47 : f32 to vector<64x1xf32>
    %92 = arith.addf %91, %90 : vector<64x1xf32>
    %93 = arith.divf %91, %92 : vector<64x1xf32>
    %94 = arith.addf %79, %93 : vector<64x1xf32>
    %cst_48 = arith.constant 9.99999996E-13 : f32
    %95 = vector.broadcast %cst_48 : f32 to vector<64x1xf32>
    %96 = arith.maximumf %94, %95 : vector<64x1xf32>
    %97 = tpu.reciprocal %96 {approx = true} : vector<64x1xf32> -> vector<64x1xf32>
    %c0_49 = arith.constant 0 : index
    %c0_50 = arith.constant 0 : index
    %98 = vector.load %arg17[%c0_49, %c0_50] : memref<64x16xf32, #tpu.memory_space<vmem>>, vector<64x16xf32>
    tpu.vector_store %arg17[%c0_49, %c0_50], %62 {strides = array<i32>} : memref<64x16xf32, #tpu.memory_space<vmem>>, vector<64x16xf32>,
    %c0_51 = arith.constant 0 : index
    %c0_52 = arith.constant 0 : index
    %99 = vector.load %arg18[%c0_51, %c0_52] : memref<64x16xf32, #tpu.memory_space<vmem>>, vector<64x16xf32>
    tpu.vector_store %arg18[%c0_51, %c0_52], %65 {strides = array<i32>} : memref<64x16xf32, #tpu.memory_space<vmem>>, vector<64x16xf32>,
    %100 = vector.broadcast %79 : vector<64x1xf32> to vector<64x16xf32>
    %101 = arith.mulf %100, %62 : vector<64x16xf32>
    %102 = vector.broadcast %93 : vector<64x1xf32> to vector<64x16xf32>
    %103 = arith.mulf %102, %65 : vector<64x16xf32>
    %104 = arith.addf %101, %103 : vector<64x16xf32>
    %105 = vector.broadcast %97 : vector<64x1xf32> to vector<64x16xf32>
    %106 = arith.mulf %104, %105 : vector<64x16xf32>
    %c0_53 = arith.constant 0 : index
    %c0_54 = arith.constant 0 : index
    %107 = vector.load %arg16[%c0_53, %c0_54] : memref<64x16xf32, #tpu.memory_space<vmem>>, vector<64x16xf32>
    tpu.vector_store %arg16[%c0_53, %c0_54], %106 {strides = array<i32>} : memref<64x16xf32, #tpu.memory_space<vmem>>, vector<64x16xf32>,
    return
  }
}

</mosaic_0001>

<llo_original>
// kernel: dagcn_forward.1
$region0: #{dagcn_forward.1}
  #allocation0 [shape = 'u32[]', space=smem, size = 0x4, offset = 0x4, fixed_abs, tag = 'smem constant byte address 0x4 - core index']
  #allocation1 [shape = 'u32[144,128]{1,0:T(1,128)}', space=vmem, size = 0x12000, scoped, tag = 'internal scratch']
  #allocation2 [shape = 'f32[1,1]{1,0:T(1,128)S(1)}', space=vmem, size = 0x200, scoped, tag = 'scoped memory for dagcn_forward.1']
  #allocation3 [shape = 'f32[1,1]{1,0:T(1,128)S(1)}', space=vmem, size = 0x200, scoped, tag = 'scoped memory for dagcn_forward.1']
  #allocation4 [shape = 'f32[1,1]{1,0:T(1,128)S(1)}', space=vmem, size = 0x200, scoped, tag = 'scoped memory for dagcn_forward.1']
  #allocation5 [shape = 'f32[1,1]{1,0:T(1,128)S(1)}', space=vmem, size = 0x200, scoped, tag = 'scoped memory for dagcn_forward.1']
  %s0 = inlined_call_operand.vmem [shape: f32[64,64], index: 0, kind: input, shape index: {}]
  %s1 = inlined_call_operand.vmem [shape: f32[64,64], index: 1, kind: input, shape index: {}]
  %s2 = inlined_call_operand.vmem [shape: f32[64,64], index: 2, kind: input, shape index: {}]
  %s3 = inlined_call_operand.vmem [shape: f32[64,64], index: 3, kind: input, shape index: {}]
  %s4 = inlined_call_operand.vmem [shape: f32[64,64], index: 4, kind: input, shape index: {}]
  %s5 = inlined_call_operand.vmem [shape: f32[1,64], index: 5, kind: input, shape index: {}]
  %s6 = inlined_call_operand.vmem [shape: f32[64,16], index: 6, kind: input, shape index: {}]
  %s7 = inlined_call_operand.vmem [shape: f32[1,16], index: 7, kind: input, shape index: {}]
  %s8 = inlined_call_operand.vmem [shape: f32[1,64], index: 8, kind: input, shape index: {}]
  %s9 = inlined_call_operand.<no memory space> [shape: f32[1,1], index: 9, kind: input, shape index: {}]
  %s10 = inlined_call_operand.vmem [shape: f32[1,64], index: 10, kind: input, shape index: {}]
  %s11 = inlined_call_operand.<no memory space> [shape: f32[1,1], index: 11, kind: input, shape index: {}]
  %s12 = inlined_call_operand.vmem [shape: f32[1,16], index: 12, kind: input, shape index: {}]
  %s13 = inlined_call_operand.<no memory space> [shape: f32[1,1], index: 13, kind: input, shape index: {}]
  %s14 = inlined_call_operand.vmem [shape: f32[1,16], index: 14, kind: input, shape index: {}]
  %s15 = inlined_call_operand.<no memory space> [shape: f32[1,1], index: 15, kind: input, shape index: {}]
  %s16 = inlined_call_operand.vmem [shape: f32[64,16], index: 16, kind: output, shape index: {0}]
  %s17 = inlined_call_operand.vmem [shape: f32[64,16], index: 17, kind: output, shape index: {1}]
  %s18 = inlined_call_operand.vmem [shape: f32[64,16], index: 18, kind: output, shape index: {2}]
  %19 = xla_tuple %s16, %s17, %s18
  %s20 = sld [smem:[#allocation0]]
  $region90: #{dagcn_forward.1} parent=0
    _
  %s22 = ssub.s32 1, %s20
  %s23 = scalar_select 0, %s22, %s20
  %v24 = vstv %s9
  %25 = vst [vmem:[#allocation2] sm:$0x1] %v24
  %v26 = vstv %s11
  %27 = vst [vmem:[#allocation3] sm:$0x1] %v26
  %v28 = vstv %s13
  %29 = vst [vmem:[#allocation4] sm:$0x1] %v28
  %v30 = vstv %s15
  %31 = vst [vmem:[#allocation5] sm:$0x1] %v30
  // Predicated region
  $region2: #{dagcn_forward.1} parent=0 // pred_check
    _
  $region3: #{dagcn_forward.1} parent=0 // pred_check_branch
    %33 = sbr.rel (0) target = $region5
  $region4: #{dagcn_forward.1} parent=0 // pred_region
    _
  $region5: #{dagcn_forward.1} parent=0 // pred_fallthru
    _
  // Predicated region
  $region6: #{dagcn_forward.1} parent=0 // pred_check
    _
  $region7: #{dagcn_forward.1} parent=0 // pred_check_branch
    %35 = sbr.rel (0) target = $region9
  $region8: #{dagcn_forward.1} parent=0 // pred_region
    _
  $region9: #{dagcn_forward.1} parent=0 // pred_fallthru
    _
  // Predicated region
  $region10: #{dagcn_forward.1} parent=0 // pred_check
    _
  $region11: #{dagcn_forward.1} parent=0 // pred_check_branch
    %37 = sbr.rel (0) target = $region13
  $region12: #{dagcn_forward.1} parent=0 // pred_region
    _
  $region13: #{dagcn_forward.1} parent=0 // pred_fallthru
    _
  // Predicated region
  $region14: #{dagcn_forward.1} parent=0 // pred_check
    _
  $region15: #{dagcn_forward.1} parent=0 // pred_check_branch
    %39 = sbr.rel (0) target = $region17
  $region16: #{dagcn_forward.1} parent=0 // pred_region
    _
  $region17: #{dagcn_forward.1} parent=0 // pred_fallthru
    _
  // Predicated region
  $region18: #{dagcn_forward.1} parent=0 // pred_check
    _
  $region19: #{dagcn_forward.1} parent=0 // pred_check_branch
    %41 = sbr.rel (0) target = $region21
  $region20: #{dagcn_forward.1} parent=0 // pred_region
    _
  $region21: #{dagcn_forward.1} parent=0 // pred_fallthru
    _
  // Predicated region
  $region22: #{dagcn_forward.1} parent=0 // pred_check
    _
  $region23: #{dagcn_forward.1} parent=0 // pred_check_branch
    %43 = sbr.rel (0) target = $region25
  $region24: #{dagcn_forward.1} parent=0 // pred_region
    _
  $region25: #{dagcn_forward.1} parent=0 // pred_fallthru
    _
  // Predicated region
  $region26: #{dagcn_forward.1} parent=0 // pred_check
    _
  $region27: #{dagcn_forward.1} parent=0 // pred_check_branch
    %45 = sbr.rel (0) target = $region29
  $region28: #{dagcn_forward.1} parent=0 // pred_region
    _
  $region29: #{dagcn_forward.1} parent=0 // pred_fallthru
    _
  // Predicated region
  $region30: #{dagcn_forward.1} parent=0 // pred_check
    _
  $region31: #{dagcn_forward.1} parent=0 // pred_check_branch
    %47 = sbr.rel (0) target = $region33
  $region32: #{dagcn_forward.1} parent=0 // pred_region
    _
  $region33: #{dagcn_forward.1} parent=0 // pred_fallthru
    _
  // Predicated region
  $region34: #{dagcn_forward.1} parent=0 // pred_check
    _
  $region35: #{dagcn_forward.1} parent=0 // pred_check_branch
    %49 = sbr.rel (0) target = $region37
  $region36: #{dagcn_forward.1} parent=0 // pred_region
    _
  $region37: #{dagcn_forward.1} parent=0 // pred_fallthru
    _
  // Predicated region
  $region38: #{dagcn_forward.1} parent=0 // pred_check
    _
  $region39: #{dagcn_forward.1} parent=0 // pred_check_branch
    %51 = sbr.rel (0) target = $region41
  $region40: #{dagcn_forward.1} parent=0 // pred_region
    _
  $region41: #{dagcn_forward.1} parent=0 // pred_fallthru
    _
  // Predicated region
  $region42: #{dagcn_forward.1} parent=0 // pred_check
    _
  $region43: #{dagcn_forward.1} parent=0 // pred_check_branch
    %53 = sbr.rel (0) target = $region45
  $region44: #{dagcn_forward.1} parent=0 // pred_region
    _
  $region45: #{dagcn_forward.1} parent=0 // pred_fallthru
    _
  // Predicated region
  $region46: #{dagcn_forward.1} parent=0 // pred_check
    _
  $region47: #{dagcn_forward.1} parent=0 // pred_check_branch
    %55 = sbr.rel (0) target = $region49
  $region48: #{dagcn_forward.1} parent=0 // pred_region
    _
  $region49: #{dagcn_forward.1} parent=0 // pred_fallthru
    _
  // Predicated region
  $region50: #{dagcn_forward.1} parent=0 // pred_check
    _
  $region51: #{dagcn_forward.1} parent=0 // pred_check_branch
    %57 = sbr.rel (0) target = $region53
  $region52: #{dagcn_forward.1} parent=0 // pred_region
    _
  $region53: #{dagcn_forward.1} parent=0 // pred_fallthru
    _
  // Predicated region
  $region54: #{dagcn_forward.1} parent=0 // pred_check
    _
  $region55: #{dagcn_forward.1} parent=0 // pred_check_branch
    %59 = sbr.rel (0) target = $region57
  $region56: #{dagcn_forward.1} parent=0 // pred_region
    _
  $region57: #{dagcn_forward.1} parent=0 // pred_fallthru
    _
  // Predicated region
  $region58: #{dagcn_forward.1} parent=0 // pred_check
    _
  $region59: #{dagcn_forward.1} parent=0 // pred_check_branch
    %61 = sbr.rel (0) target = $region61
  $region60: #{dagcn_forward.1} parent=0 // pred_region
    _
  $region61: #{dagcn_forward.1} parent=0 // pred_fallthru
    _
  // Predicated region
  $region62: #{dagcn_forward.1} parent=0 // pred_check
    _
  $region63: #{dagcn_forward.1} parent=0 // pred_check_branch
    %63 = sbr.rel (0) target = $region65
  $region64: #{dagcn_forward.1} parent=0 // pred_region
    _
  $region65: #{dagcn_forward.1} parent=0 // pred_fallthru
    _
  %v64 = vld [vmem:[%s2] sm:$0xff]
  %v65 = vld [vmem:[%s2 + $0x8] sm:$0xff]
  %v66 = vld [vmem:[%s2 + $0x10] sm:$0xff]
  %v67 = vld [vmem:[%s2 + $0x18] sm:$0xff]
  %v68 = vld [vmem:[%s2 + $0x20] sm:$0xff]
  %v69 = vld [vmem:[%s2 + $0x28] sm:$0xff]
  %v70 = vld [vmem:[%s2 + $0x30] sm:$0xff]
  %v71 = vld [vmem:[%s2 + $0x38] sm:$0xff]
  %v72 = vld [vmem:[%s3] sm:$0xff]
  %v73 = vld [vmem:[%s3 + $0x8] sm:$0xff]
  %v74 = vld [vmem:[%s3 + $0x10] sm:$0xff]
  %v75 = vld [vmem:[%s3 + $0x18] sm:$0xff]
  %v76 = vld [vmem:[%s3 + $0x20] sm:$0xff]
  %v77 = vld [vmem:[%s3 + $0x28] sm:$0xff]
  %v78 = vld [vmem:[%s3 + $0x30] sm:$0xff]
  %v79 = vld [vmem:[%s3 + $0x38] sm:$0xff]
  %v80 = vld [vmem:[%s4] sm:$0xff]
  %v81 = vld [vmem:[%s4 + $0x8] sm:$0xff]
  %v82 = vld [vmem:[%s4 + $0x10] sm:$0xff]
  %v83 = vld [vmem:[%s4 + $0x18] sm:$0xff]
  %v84 = vld [vmem:[%s4 + $0x20] sm:$0xff]
  %v85 = vld [vmem:[%s4 + $0x28] sm:$0xff]
  %v86 = vld [vmem:[%s4 + $0x30] sm:$0xff]
  %v87 = vld [vmem:[%s4 + $0x38] sm:$0xff]
  %v88 = vld [vmem:[%s5] sm:$0x1]
  %v89 = vld [vmem:[%s0] sm:$0xff]
  %v90 = vld [vmem:[%s0 + $0x8] sm:$0xff]
  %v91 = vld [vmem:[%s0 + $0x10] sm:$0xff]
  %v92 = vld [vmem:[%s0 + $0x18] sm:$0xff]
  %v93 = vld [vmem:[%s0 + $0x20] sm:$0xff]
  %v94 = vld [vmem:[%s0 + $0x28] sm:$0xff]
  %v95 = vld [vmem:[%s0 + $0x30] sm:$0xff]
  %v96 = vld [vmem:[%s0 + $0x38] sm:$0xff]
  %vm97 = vcmask 523264
  %v99 = vsel %vm97, %v89, 0
  %v102 = vsel %vm97, %v90, 0
  %v105 = vsel %vm97, %v91, 0
  %v108 = vsel %vm97, %v92, 0
  %v111 = vsel %vm97, %v93, 0
  %v114 = vsel %vm97, %v94, 0
  %v117 = vsel %vm97, %v95, 0
  %v120 = vsel %vm97, %v96, 0
  %122 = vmatprep.subr.mxu0 0.0
  %123 = vmatpush1.msra.mxu0 %v80
  %124 = vmatprep.subr.mxu0 0.0
  %125 = vmatpush1.msra.mxu0 %v81
  %126 = vmatprep.subr.mxu0 0.0
  %127 = vmatpush1.msra.mxu0 %v82
  %128 = vmatprep.subr.mxu0 0.0
  %129 = vmatpush1.msra.mxu0 %v83
  %130 = vmatprep.subr.mxu0 0.0
  %131 = vmatpush1.msra.mxu0 %v84
  %132 = vmatprep.subr.mxu0 0.0
  %133 = vmatpush1.msra.mxu0 %v85
  %134 = vmatprep.subr.mxu0 0.0
  %135 = vmatpush1.msra.mxu0 %v86
  %136 = vmatprep.subr.mxu0 0.0
  %137 = vmatpush1.msra.mxu0 %v87
  %138 = vmatprep.subr.mxu0 0.0
  %139 = vmatpush1.msra.mxu0 0.0
  %140 = vmatprep.subr.mxu0 0.0
  %141 = vmatpush1.msra.mxu0 0.0
  %142 = vmatprep.subr.mxu0 0.0
  %143 = vmatpush1.msra.mxu0 0.0
  %144 = vmatprep.subr.mxu0 0.0
  %145 = vmatpush1.msra.mxu0 0.0
  %146 = vmatprep.subr.mxu0 0.0
  %147 = vmatpush1.msra.mxu0 0.0
  %148 = vmatprep.subr.mxu0 0.0
  %149 = vmatpush1.msra.mxu0 0.0
  %150 = vmatprep.subr.mxu0 0.0
  %151 = vmatpush1.msra.mxu0 0.0
  %152 = vmatprep.subr.mxu0 0.0
  %153 = vmatpush1.msra.mxu0 0.0
  %154 = vmatprep.subr.mxu0 0.0
  %155 = vmatpush1.msra.mxu0 0.0
  %156 = vmatprep.subr.mxu0 0.0
  %157 = vmatpush1.msra.mxu0 0.0
  %158 = vmatprep.subr.mxu0 0.0
  %159 = vmatpush1.msra.mxu0 0.0
  %160 = vmatprep.subr.mxu0 0.0
  %161 = vmatpush1.msra.mxu0 0.0
  %162 = vmatprep.subr.mxu0 0.0
  %163 = vmatpush1.msra.mxu0 0.0
  %164 = vmatprep.subr.mxu0 0.0
  %165 = vmatpush1.msra.mxu0 0.0
  %166 = vmatprep.subr.mxu0 0.0
  %167 = vmatpush1.msra.mxu0 0.0
  %168 = vmatprep.subr.mxu0 0.0
  %169 = vmatpush1.msra.mxu0 0.0
  %170 = vmatprep.subr.mxu0 0.0
  %171 = vmatpush1.msra.mxu0 0.0
  %172 = vmatprep.subr.mxu0 0.0
  %173 = vmatpush1.msra.mxu0 0.0
  %174 = vmatprep.subr.mxu0 0.0
  %175 = vmatpush1.msra.mxu0 0.0
  %176 = vmatprep.subr.mxu0 0.0
  %177 = vmatpush1.msra.mxu0 0.0
  %178 = vmatprep.subr.mxu0 0.0
  %179 = vmatpush1.msra.mxu0 0.0
  %180 = vmatprep.subr.mxu0 0.0
  %181 = vmatpush1.msra.mxu0 0.0
  %182 = vmatprep.subr.mxu0 0.0
  %183 = vmatpush1.msra.mxu0 0.0
  %184 = vmatprep.subr.mxu0 0.0
  %185 = vmatpush1.msra.mxu0 0.0
  %186 = vmatprep.mubr.f32.mxu0 0.0
  %187 = vmatmul.mubr.f32.gmra.mrb[0].mxu0 %v99
  %v188 = vpop.f32.mrb[0].mxu0
  %v189 = vadd.f32 0.0, %v188
  %v190 = vpop.f32.mrb[0].mxu0
  %191 = vmatprep.mubr.f32.mxu0 0.0
  %192 = vmatmul.mubr.f32.gmra.mrb[0].mxu0 %v102
  %v193 = vpop.f32.mrb[0].mxu0
  %v194 = vadd.f32 0.0, %v193
  %v195 = vpop.f32.mrb[0].mxu0
  %196 = vmatprep.mubr.f32.mxu0 0.0
  %197 = vmatmul.mubr.f32.gmra.mrb[0].mxu0 %v105
  %v198 = vpop.f32.mrb[0].mxu0
  %v199 = vadd.f32 0.0, %v198
  %v200 = vpop.f32.mrb[0].mxu0
  %201 = vmatprep.mubr.f32.mxu0 0.0
  %202 = vmatmul.mubr.f32.gmra.mrb[0].mxu0 %v108
  %v203 = vpop.f32.mrb[0].mxu0
  %v204 = vadd.f32 0.0, %v203
  %v205 = vpop.f32.mrb[0].mxu0
  %206 = vmatprep.mubr.f32.mxu0 0.0
  %207 = vmatmul.mubr.f32.gmra.mrb[0].mxu0 %v111
  %v208 = vpop.f32.mrb[0].mxu0
  %v209 = vadd.f32 0.0, %v208
  %v210 = vpop.f32.mrb[0].mxu0
  %211 = vmatprep.mubr.f32.mxu0 0.0
  %212 = vmatmul.mubr.f32.gmra.mrb[0].mxu0 %v114
  %v213 = vpop.f32.mrb[0].mxu0
  %v214 = vadd.f32 0.0, %v213
  %v215 = vpop.f32.mrb[0].mxu0
  %216 = vmatprep.mubr.f32.mxu0 0.0
  %217 = vmatmul.mubr.f32.gmra.mrb[0].mxu0 %v117
  %v218 = vpop.f32.mrb[0].mxu0
  %v219 = vadd.f32 0.0, %v218
  %v220 = vpop.f32.mrb[0].mxu0
  %221 = vmatprep.mubr.f32.mxu0 0.0
  %222 = vmatmul.mubr.f32.gmra.mrb[0].mxu0 %v120
  %v223 = vpop.f32.mrb[0].mxu0
  %v224 = vadd.f32 0.0, %v223
  %v225 = vpop.f32.mrb[0].mxu0
  %226 = vdwg.mxu0
  %v227 = vld [vmem:[%s1] sm:$0xff]
  %v228 = vld [vmem:[%s1 + $0x8] sm:$0xff]
  %v229 = vld [vmem:[%s1 + $0x10] sm:$0xff]
  %v230 = vld [vmem:[%s1 + $0x18] sm:$0xff]
  %v231 = vld [vmem:[%s1 + $0x20] sm:$0xff]
  %v232 = vld [vmem:[%s1 + $0x28] sm:$0xff]
  %v233 = vld [vmem:[%s1 + $0x30] sm:$0xff]
  %v234 = vld [vmem:[%s1 + $0x38] sm:$0xff]
  %v236 = vsel %vm97, %v227, 0
  %v239 = vsel %vm97, %v228, 0
  %v242 = vsel %vm97, %v229, 0
  %v245 = vsel %vm97, %v230, 0
  %v248 = vsel %vm97, %v231, 0
  %v251 = vsel %vm97, %v232, 0
  %v254 = vsel %vm97, %v233, 0
  %v257 = vsel %vm97, %v234, 0
  %259 = vmatprep.subr.mxu0 0.0
  %260 = vmatpush1.msra.mxu0 %v80
  %261 = vmatprep.subr.mxu0 0.0
  %262 = vmatpush1.msra.mxu0 %v81
  %263 = vmatprep.subr.mxu0 0.0
  %264 = vmatpush1.msra.mxu0 %v82
  %265 = vmatprep.subr.mxu0 0.0
  %266 = vmatpush1.msra.mxu0 %v83
  %267 = vmatprep.subr.mxu0 0.0
  %268 = vmatpush1.msra.mxu0 %v84
  %269 = vmatprep.subr.mxu0 0.0
  %270 = vmatpush1.msra.mxu0 %v85
  %271 = vmatprep.subr.mxu0 0.0
  %272 = vmatpush1.msra.mxu0 %v86
  %273 = vmatprep.subr.mxu0 0.0
  %274 = vmatpush1.msra.mxu0 %v87
  %275 = vmatprep.subr.mxu0 0.0
  %276 = vmatpush1.msra.mxu0 0.0
  %277 = vmatprep.subr.mxu0 0.0
  %278 = vmatpush1.msra.mxu0 0.0
  %279 = vmatprep.subr.mxu0 0.0
  %280 = vmatpush1.msra.mxu0 0.0
  %281 = vmatprep.subr.mxu0 0.0
  %282 = vmatpush1.msra.mxu0 0.0
  %283 = vmatprep.subr.mxu0 0.0
  %284 = vmatpush1.msra.mxu0 0.0
  %285 = vmatprep.subr.mxu0 0.0
  %286 = vmatpush1.msra.mxu0 0.0
  %287 = vmatprep.subr.mxu0 0.0
  %288 = vmatpush1.msra.mxu0 0.0
  %289 = vmatprep.subr.mxu0 0.0
  %290 = vmatpush1.msra.mxu0 0.0
  %291 = vmatprep.subr.mxu0 0.0
  %292 = vmatpush1.msra.mxu0 0.0
  %293 = vmatprep.subr.mxu0 0.0
  %294 = vmatpush1.msra.mxu0 0.0
  %295 = vmatprep.subr.mxu0 0.0
  %296 = vmatpush1.msra.mxu0 0.0
  %297 = vmatprep.subr.mxu0 0.0
  %298 = vmatpush1.msra.mxu0 0.0
  %299 = vmatprep.subr.mxu0 0.0
  %300 = vmatpush1.msra.mxu0 0.0
  %301 = vmatprep.subr.mxu0 0.0
  %302 = vmatpush1.msra.mxu0 0.0
  %303 = vmatprep.subr.mxu0 0.0
  %304 = vmatpush1.msra.mxu0 0.0
  %305 = vmatprep.subr.mxu0 0.0
  %306 = vmatpush1.msra.mxu0 0.0
  %307 = vmatprep.subr.mxu0 0.0
  %308 = vmatpush1.msra.mxu0 0.0
  %309 = vmatprep.subr.mxu0 0.0
  %310 = vmatpush1.msra.mxu0 0.0
  %311 = vmatprep.subr.mxu0 0.0
  %312 = vmatpush1.msra.mxu0 0.0
  %313 = vmatprep.subr.mxu0 0.0
  %314 = vmatpush1.msra.mxu0 0.0
  %315 = vmatprep.subr.mxu0 0.0
  %316 = vmatpush1.msra.mxu0 0.0
  %317 = vmatprep.subr.mxu0 0.0
  %318 = vmatpush1.msra.mxu0 0.0
  %319 = vmatprep.subr.mxu0 0.0
  %320 = vmatpush1.msra.mxu0 0.0
  %321 = vmatprep.subr.mxu0 0.0
  %322 = vmatpush1.msra.mxu0 0.0
  %323 = vmatprep.mubr.f32.mxu0 0.0
  %324 = vmatmul.mubr.f32.gmra.mrb[0].mxu0 %v236
  %v325 = vpop.f32.mrb[0].mxu0
  %v326 = vadd.f32 0.0, %v325
  %v327 = vpop.f32.mrb[0].mxu0
  %328 = vmatprep.mubr.f32.mxu0 0.0
  %329 = vmatmul.mubr.f32.gmra.mrb[0].mxu0 %v239
  %v330 = vpop.f32.mrb[0].mxu0
  %v331 = vadd.f32 0.0, %v330
  %v332 = vpop.f32.mrb[0].mxu0
  %333 = vmatprep.mubr.f32.mxu0 0.0
  %334 = vmatmul.mubr.f32.gmra.mrb[0].mxu0 %v242
  %v335 = vpop.f32.mrb[0].mxu0
  %v336 = vadd.f32 0.0, %v335
  %v337 = vpop.f32.mrb[0].mxu0
  %338 = vmatprep.mubr.f32.mxu0 0.0
  %339 = vmatmul.mubr.f32.gmra.mrb[0].mxu0 %v245
  %v340 = vpop.f32.mrb[0].mxu0
  %v341 = vadd.f32 0.0, %v340
  %v342 = vpop.f32.mrb[0].mxu0
  %343 = vmatprep.mubr.f32.mxu0 0.0
  %344 = vmatmul.mubr.f32.gmra.mrb[0].mxu0 %v248
  %v345 = vpop.f32.mrb[0].mxu0
  %v346 = vadd.f32 0.0, %v345
  %v347 = vpop.f32.mrb[0].mxu0
  %348 = vmatprep.mubr.f32.mxu0 0.0
  %349 = vmatmul.mubr.f32.gmra.mrb[0].mxu0 %v251
  %v350 = vpop.f32.mrb[0].mxu0
  %v351 = vadd.f32 0.0, %v350
  %v352 = vpop.f32.mrb[0].mxu0
  %353 = vmatprep.mubr.f32.mxu0 0.0
  %354 = vmatmul.mubr.f32.gmra.mrb[0].mxu0 %v254
  %v355 = vpop.f32.mrb[0].mxu0
  %v356 = vadd.f32 0.0, %v355
  %v357 = vpop.f32.mrb[0].mxu0
  %358 = vmatprep.mubr.f32.mxu0 0.0
  %359 = vmatmul.mubr.f32.gmra.mrb[0].mxu0 %v257
  %v360 = vpop.f32.mrb[0].mxu0
  %v361 = vadd.f32 0.0, %v360
  %v362 = vpop.f32.mrb[0].mxu0
  %363 = vdwg.mxu0
  %v365 = vlaneseq
  %v366 = vshrl.u32 %v365, 7
  %v367 = vsub.s32 0, %v366
  %v368 = vrot.slane %v88, %v367
  %v371 = vsel %vm97, %v64, 0
  %v374 = vsel %vm97, %v65, 0
  %v377 = vsel %vm97, %v66, 0
  %v380 = vsel %vm97, %v67, 0
  %v383 = vsel %vm97, %v68, 0
  %v386 = vsel %vm97, %v69, 0
  %v389 = vsel %vm97, %v70, 0
  %v392 = vsel %vm97, %v71, 0
  %394 = vmatprep.subr.mxu0 0.0
  %395 = vmatpush1.msra.mxu0 %v189
  %396 = vmatprep.subr.mxu0 0.0
  %397 = vmatpush1.msra.mxu0 %v194
  %398 = vmatprep.subr.mxu0 0.0
  %399 = vmatpush1.msra.mxu0 %v199
  %400 = vmatprep.subr.mxu0 0.0
  %401 = vmatpush1.msra.mxu0 %v204
  %402 = vmatprep.subr.mxu0 0.0
  %403 = vmatpush1.msra.mxu0 %v209
  %404 = vmatprep.subr.mxu0 0.0
  %405 = vmatpush1.msra.mxu0 %v214
  %406 = vmatprep.subr.mxu0 0.0
  %407 = vmatpush1.msra.mxu0 %v219
  %408 = vmatprep.subr.mxu0 0.0
  %409 = vmatpush1.msra.mxu0 %v224
  %410 = vmatprep.subr.mxu0 0.0
  %411 = vmatpush1.msra.mxu0 0.0
  %412 = vmatprep.subr.mxu0 0.0
  %413 = vmatpush1.msra.mxu0 0.0
  %414 = vmatprep.subr.mxu0 0.0
  %415 = vmatpush1.msra.mxu0 0.0
  %416 = vmatprep.subr.mxu0 0.0
  %417 = vmatpush1.msra.mxu0 0.0
  %418 = vmatprep.subr.mxu0 0.0
  %419 = vmatpush1.msra.mxu0 0.0
  %420 = vmatprep.subr.mxu0 0.0
  %421 = vmatpush1.msra.mxu0 0.0
  %422 = vmatprep.subr.mxu0 0.0
  %423 = vmatpush1.msra.mxu0 0.0
  %424 = vmatprep.subr.mxu0 0.0
  %425 = vmatpush1.msra.mxu0 0.0
  %426 = vmatprep.subr.mxu0 0.0
  %427 = vmatpush1.msra.mxu0 0.0
  %428 = vmatprep.subr.mxu0 0.0
  %429 = vmatpush1.msra.mxu0 0.0
  %430 = vmatprep.subr.mxu0 0.0
  %431 = vmatpush1.msra.mxu0 0.0
  %432 = vmatprep.subr.mxu0 0.0
  %433 = vmatpush1.msra.mxu0 0.0
  %434 = vmatprep.subr.mxu0 0.0
  %435 = vmatpush1.msra.mxu0 0.0
  %436 = vmatprep.subr.mxu0 0.0
  %437 = vmatpush1.msra.mxu0 0.0
  %438 = vmatprep.subr.mxu0 0.0
  %439 = vmatpush1.msra.mxu0 0.0
  %440 = vmatprep.subr.mxu0 0.0
  %441 = vmatpush1.msra.mxu0 0.0
  %442 = vmatprep.subr.mxu0 0.0
  %443 = vmatpush1.msra.mxu0 0.0
  %444 = vmatprep.subr.mxu0 0.0
  %445 = vmatpush1.msra.mxu0 0.0
  %446 = vmatprep.subr.mxu0 0.0
  %447 = vmatpush1.msra.mxu0 0.0
  %448 = vmatprep.subr.mxu0 0.0
  %449 = vmatpush1.msra.mxu0 0.0
  %450 = vmatprep.subr.mxu0 0.0
  %451 = vmatpush1.msra.mxu0 0.0
  %452 = vmatprep.subr.mxu0 0.0
  %453 = vmatpush1.msra.mxu0 0.0
  %454 = vmatprep.subr.mxu0 0.0
  %455 = vmatpush1.msra.mxu0 0.0
  %456 = vmatprep.subr.mxu0 0.0
  %457 = vmatpush1.msra.mxu0 0.0
  %458 = vmatprep.mubr.f32.mxu0 0.0
  %459 = vmatmul.mubr.f32.gmra.mrb[0].mxu0 %v371
  %v460 = vpop.f32.mrb[0].mxu0
  %v461 = vadd.f32 %v368, %v460
  %v462 = vpop.f32.mrb[0].mxu0
  %463 = vmatprep.mubr.f32.mxu0 0.0
  %464 = vmatmul.mubr.f32.gmra.mrb[0].mxu0 %v374
  %v465 = vpop.f32.mrb[0].mxu0
  %v466 = vadd.f32 %v368, %v465
  %v467 = vpop.f32.mrb[0].mxu0
  %468 = vmatprep.mubr.f32.mxu0 0.0
  %469 = vmatmul.mubr.f32.gmra.mrb[0].mxu0 %v377
  %v470 = vpop.f32.mrb[0].mxu0
  %v471 = vadd.f32 %v368, %v470
  %v472 = vpop.f32.mrb[0].mxu0
  %473 = vmatprep.mubr.f32.mxu0 0.0
  %474 = vmatmul.mubr.f32.gmra.mrb[0].mxu0 %v380
  %v475 = vpop.f32.mrb[0].mxu0
  %v476 = vadd.f32 %v368, %v475
  %v477 = vpop.f32.mrb[0].mxu0
  %478 = vmatprep.mubr.f32.mxu0 0.0
  %479 = vmatmul.mubr.f32.gmra.mrb[0].mxu0 %v383
  %v480 = vpop.f32.mrb[0].mxu0
  %v481 = vadd.f32 %v368, %v480
  %v482 = vpop.f32.mrb[0].mxu0
  %483 = vmatprep.mubr.f32.mxu0 0.0
  %484 = vmatmul.mubr.f32.gmra.mrb[0].mxu0 %v386
  %v485 = vpop.f32.mrb[0].mxu0
  %v486 = vadd.f32 %v368, %v485
  %v487 = vpop.f32.mrb[0].mxu0
  %488 = vmatprep.mubr.f32.mxu0 0.0
  %489 = vmatmul.mubr.f32.gmra.mrb[0].mxu0 %v389
  %v490 = vpop.f32.mrb[0].mxu0
  %v491 = vadd.f32 %v368, %v490
  %v492 = vpop.f32.mrb[0].mxu0
  %493 = vmatprep.mubr.f32.mxu0 0.0
  %494 = vmatmul.mubr.f32.gmra.mrb[0].mxu0 %v392
  %v495 = vpop.f32.mrb[0].mxu0
  %v496 = vadd.f32 %v368, %v495
  %v497 = vpop.f32.mrb[0].mxu0
  %498 = vdwg.mxu0
  %v499 = vmax.f32 %v461, 0.0
  %v500 = vmax.f32 %v466, 0.0
  %v501 = vmax.f32 %v471, 0.0
  %v502 = vmax.f32 %v476, 0.0
  %v503 = vmax.f32 %v481, 0.0
  %v504 = vmax.f32 %v486, 0.0
  %v505 = vmax.f32 %v491, 0.0
  %v506 = vmax.f32 %v496, 0.0
  %v508 = vsel %vm97, %v72, 0
  %v511 = vsel %vm97, %v73, 0
  %v514 = vsel %vm97, %v74, 0
  %v517 = vsel %vm97, %v75, 0
  %v520 = vsel %vm97, %v76, 0
  %v523 = vsel %vm97, %v77, 0
  %v526 = vsel %vm97, %v78, 0
  %v529 = vsel %vm97, %v79, 0
  %531 = vmatprep.subr.mxu0 0.0
  %532 = vmatpush1.msra.mxu0 %v326
  %533 = vmatprep.subr.mxu0 0.0
  %534 = vmatpush1.msra.mxu0 %v331
  %535 = vmatprep.subr.mxu0 0.0
  %536 = vmatpush1.msra.mxu0 %v336
  %537 = vmatprep.subr.mxu0 0.0
  %538 = vmatpush1.msra.mxu0 %v341
  %539 = vmatprep.subr.mxu0 0.0
  %540 = vmatpush1.msra.mxu0 %v346
  %541 = vmatprep.subr.mxu0 0.0
  %542 = vmatpush1.msra.mxu0 %v351
  %543 = vmatprep.subr.mxu0 0.0
  %544 = vmatpush1.msra.mxu0 %v356
  %545 = vmatprep.subr.mxu0 0.0
  %546 = vmatpush1.msra.mxu0 %v361
  %547 = vmatprep.subr.mxu0 0.0
  %548 = vmatpush1.msra.mxu0 0.0
  %549 = vmatprep.subr.mxu0 0.0
  %550 = vmatpush1.msra.mxu0 0.0
  %551 = vmatprep.subr.mxu0 0.0
  %552 = vmatpush1.msra.mxu0 0.0
  %553 = vmatprep.subr.mxu0 0.0
  %554 = vmatpush1.msra.mxu0 0.0
  %555 = vmatprep.subr.mxu0 0.0
  %556 = vmatpush1.msra.mxu0 0.0
  %557 = vmatprep.subr.mxu0 0.0
  %558 = vmatpush1.msra.mxu0 0.0
  %559 = vmatprep.subr.mxu0 0.0
  %560 = vmatpush1.msra.mxu0 0.0
  %561 = vmatprep.subr.mxu0 0.0
  %562 = vmatpush1.msra.mxu0 0.0
  %563 = vmatprep.subr.mxu0 0.0
  %564 = vmatpush1.msra.mxu0 0.0
  %565 = vmatprep.subr.mxu0 0.0
  %566 = vmatpush1.msra.mxu0 0.0
  %567 = vmatprep.subr.mxu0 0.0
  %568 = vmatpush1.msra.mxu0 0.0
  %569 = vmatprep.subr.mxu0 0.0
  %570 = vmatpush1.msra.mxu0 0.0
  %571 = vmatprep.subr.mxu0 0.0
  %572 = vmatpush1.msra.mxu0 0.0
  %573 = vmatprep.subr.mxu0 0.0
  %574 = vmatpush1.msra.mxu0 0.0
  %575 = vmatprep.subr.mxu0 0.0
  %576 = vmatpush1.msra.mxu0 0.0
  %577 = vmatprep.subr.mxu0 0.0
  %578 = vmatpush1.msra.mxu0 0.0
  %579 = vmatprep.subr.mxu0 0.0
  %580 = vmatpush1.msra.mxu0 0.0
  %581 = vmatprep.subr.mxu0 0.0
  %582 = vmatpush1.msra.mxu0 0.0
  %583 = vmatprep.subr.mxu0 0.0
  %584 = vmatpush1.msra.mxu0 0.0
  %585 = vmatprep.subr.mxu0 0.0
  %586 = vmatpush1.msra.mxu0 0.0
  %587 = vmatprep.subr.mxu0 0.0
  %588 = vmatpush1.msra.mxu0 0.0
  %589 = vmatprep.subr.mxu0 0.0
  %590 = vmatpush1.msra.mxu0 0.0
  %591 = vmatprep.subr.mxu0 0.0
  %592 = vmatpush1.msra.mxu0 0.0
  %593 = vmatprep.subr.mxu0 0.0
  %594 = vmatpush1.msra.mxu0 0.0
  %595 = vmatprep.mubr.f32.mxu0 0.0
  %596 = vmatmul.mubr.f32.gmra.mrb[0].mxu0 %v508
  %v597 = vpop.f32.mrb[0].mxu0
  %v598 = vadd.f32 %v368, %v597
  %v599 = vpop.f32.mrb[0].mxu0
  %600 = vmatprep.mubr.f32.mxu0 0.0
  %601 = vmatmul.mubr.f32.gmra.mrb[0].mxu0 %v511
  %v602 = vpop.f32.mrb[0].mxu0
  %v603 = vadd.f32 %v368, %v602
  %v604 = vpop.f32.mrb[0].mxu0
  %605 = vmatprep.mubr.f32.mxu0 0.0
  %606 = vmatmul.mubr.f32.gmra.mrb[0].mxu0 %v514
  %v607 = vpop.f32.mrb[0].mxu0
  %v608 = vadd.f32 %v368, %v607
  %v609 = vpop.f32.mrb[0].mxu0
  %610 = vmatprep.mubr.f32.mxu0 0.0
  %611 = vmatmul.mubr.f32.gmra.mrb[0].mxu0 %v517
  %v612 = vpop.f32.mrb[0].mxu0
  %v613 = vadd.f32 %v368, %v612
  %v614 = vpop.f32.mrb[0].mxu0
  %615 = vmatprep.mubr.f32.mxu0 0.0
  %616 = vmatmul.mubr.f32.gmra.mrb[0].mxu0 %v520
  %v617 = vpop.f32.mrb[0].mxu0
  %v618 = vadd.f32 %v368, %v617
  %v619 = vpop.f32.mrb[0].mxu0
  %620 = vmatprep.mubr.f32.mxu0 0.0
  %621 = vmatmul.mubr.f32.gmra.mrb[0].mxu0 %v523
  %v622 = vpop.f32.mrb[0].mxu0
  %v623 = vadd.f32 %v368, %v622
  %v624 = vpop.f32.mrb[0].mxu0
  %625 = vmatprep.mubr.f32.mxu0 0.0
  %626 = vmatmul.mubr.f32.gmra.mrb[0].mxu0 %v526
  %v627 = vpop.f32.mrb[0].mxu0
  %v628 = vadd.f32 %v368, %v627
  %v629 = vpop.f32.mrb[0].mxu0
  %630 = vmatprep.mubr.f32.mxu0 0.0
  %631 = vmatmul.mubr.f32.gmra.mrb[0].mxu0 %v529
  %v632 = vpop.f32.mrb[0].mxu0
  %v633 = vadd.f32 %v368, %v632
  %v634 = vpop.f32.mrb[0].mxu0
  %635 = vdwg.mxu0
  %v636 = vmax.f32 %v598, 0.0
  %v637 = vmax.f32 %v603, 0.0
  %v638 = vmax.f32 %v608, 0.0
  %v639 = vmax.f32 %v613, 0.0
  %v640 = vmax.f32 %v618, 0.0
  %v641 = vmax.f32 %v623, 0.0
  %v642 = vmax.f32 %v628, 0.0
  %v643 = vmax.f32 %v633, 0.0
  %v644 = vld [vmem:[%s8] sm:$0x1]
  %v646 = vlaneseq
  %v647 = vshrl.u32 %v646, 7
  %v648 = vsub.s32 0, %v647
  %v649 = vrot.slane %v644, %v648
  %v651 = vmul.f32 %v499, %v649
  %v652 = vmul.f32 %v500, %v649
  %v653 = vmul.f32 %v501, %v649
  %v654 = vmul.f32 %v502, %v649
  %v655 = vmul.f32 %v503, %v649
  %v656 = vmul.f32 %v504, %v649
  %v657 = vmul.f32 %v505, %v649
  %v658 = vmul.f32 %v506, %v649
  %v659 = vsel %vm97, %v651, 0.0
  %660 = vadd.xlane.f32.xlu0 %v659
  %v661 = vpop.xlane.xlu0 %660
  %v662 = vsel %vm97, %v652, 0.0
  %663 = vadd.xlane.f32.xlu0 %v662
  %v664 = vpop.xlane.xlu0 %663
  %v665 = vsel %vm97, %v653, 0.0
  %666 = vadd.xlane.f32.xlu0 %v665
  %v667 = vpop.xlane.xlu0 %666
  %v668 = vsel %vm97, %v654, 0.0
  %669 = vadd.xlane.f32.xlu0 %v668
  %v670 = vpop.xlane.xlu0 %669
  %v671 = vsel %vm97, %v655, 0.0
  %672 = vadd.xlane.f32.xlu0 %v671
  %v673 = vpop.xlane.xlu0 %672
  %v674 = vsel %vm97, %v656, 0.0
  %675 = vadd.xlane.f32.xlu0 %v674
  %v676 = vpop.xlane.xlu0 %675
  %v677 = vsel %vm97, %v657, 0.0
  %678 = vadd.xlane.f32.xlu0 %v677
  %v679 = vpop.xlane.xlu0 %678
  %v680 = vsel %vm97, %v658, 0.0
  %681 = vadd.xlane.f32.xlu0 %v680
  %v682 = vpop.xlane.xlu0 %681
  %v683 = vld [vmem:[#allocation2] sm:$0x1]
  %s684 = vtos %v683
  %v685 = vstv %s684
  %v686 = vadd.f32 %v661, %v685
  %v687 = vadd.f32 %v664, %v685
  %v688 = vadd.f32 %v667, %v685
  %v689 = vadd.f32 %v670, %v685
  %v690 = vadd.f32 %v673, %v685
  %v691 = vadd.f32 %v676, %v685
  %v692 = vadd.f32 %v679, %v685
  %v693 = vadd.f32 %v682, %v685
  %v694 = vxor.u32 %v686, 2147483648
  %v695 = vxor.u32 %v687, 2147483648
  %v696 = vxor.u32 %v688, 2147483648
  %v697 = vxor.u32 %v689, 2147483648
  %v698 = vxor.u32 %v690, 2147483648
  %v699 = vxor.u32 %v691, 2147483648
  %v700 = vxor.u32 %v692, 2147483648
  %v701 = vxor.u32 %v693, 2147483648
  %v702 = vmul.f32 %v694, 1.442695
  %v703 = vpow.pop %v702
  %v704 = vmul.f32 %v695, 1.442695
  %v705 = vpow.pop %v704
  %v706 = vmul.f32 %v696, 1.442695
  %v707 = vpow.pop %v706
  %v708 = vmul.f32 %v697, 1.442695
  %v709 = vpow.pop %v708
  %v710 = vmul.f32 %v698, 1.442695
  %v711 = vpow.pop %v710
  %v712 = vmul.f32 %v699, 1.442695
  %v713 = vpow.pop %v712
  %v714 = vmul.f32 %v700, 1.442695
  %v715 = vpow.pop %v714
  %v716 = vmul.f32 %v701, 1.442695
  %v717 = vpow.pop %v716
  %v718 = vadd.f32 %v703, 1.0
  %v719 = vadd.f32 %v705, 1.0
  %v720 = vadd.f32 %v707, 1.0
  %v721 = vadd.f32 %v709, 1.0
  %v722 = vadd.f32 %v711, 1.0
  %v723 = vadd.f32 %v713, 1.0
  %v724 = vadd.f32 %v715, 1.0
  %v725 = vadd.f32 %v717, 1.0
  %v726 = vrcp.pop %v718
  %v727 = vmul.f32 1.0, %v726
  %v728 = vrcp.pop %v719
  %v729 = vmul.f32 1.0, %v728
  %v730 = vrcp.pop %v720
  %v731 = vmul.f32 1.0, %v730
  %v732 = vrcp.pop %v721
  %v733 = vmul.f32 1.0, %v732
  %v734 = vrcp.pop %v722
  %v735 = vmul.f32 1.0, %v734
  %v736 = vrcp.pop %v723
  %v737 = vmul.f32 1.0, %v736
  %v738 = vrcp.pop %v724
  %v739 = vmul.f32 1.0, %v738
  %v740 = vrcp.pop %v725
  %v741 = vmul.f32 1.0, %v740
  %v742 = vld [vmem:[%s10] sm:$0x1]
  %v744 = vlaneseq
  %v745 = vshrl.u32 %v744, 7
  %v746 = vsub.s32 0, %v745
  %v747 = vrot.slane %v742, %v746
  %v749 = vmul.f32 %v636, %v747
  %v750 = vmul.f32 %v637, %v747
  %v751 = vmul.f32 %v638, %v747
  %v752 = vmul.f32 %v639, %v747
  %v753 = vmul.f32 %v640, %v747
  %v754 = vmul.f32 %v641, %v747
  %v755 = vmul.f32 %v642, %v747
  %v756 = vmul.f32 %v643, %v747
  %v757 = vsel %vm97, %v749, 0.0
  %758 = vadd.xlane.f32.xlu0 %v757
  %v759 = vpop.xlane.xlu0 %758
  %v760 = vsel %vm97, %v750, 0.0
  %761 = vadd.xlane.f32.xlu0 %v760
  %v762 = vpop.xlane.xlu0 %761
  %v763 = vsel %vm97, %v751, 0.0
  %764 = vadd.xlane.f32.xlu0 %v763
  %v765 = vpop.xlane.xlu0 %764
  %v766 = vsel %vm97, %v752, 0.0
  %767 = vadd.xlane.f32.xlu0 %v766
  %v768 = vpop.xlane.xlu0 %767
  %v769 = vsel %vm97, %v753, 0.0
  %770 = vadd.xlane.f32.xlu0 %v769
  %v771 = vpop.xlane.xlu0 %770
  %v772 = vsel %vm97, %v754, 0.0
  %773 = vadd.xlane.f32.xlu0 %v772
  %v774 = vpop.xlane.xlu0 %773
  %v775 = vsel %vm97, %v755, 0.0
  %776 = vadd.xlane.f32.xlu0 %v775
  %v777 = vpop.xlane.xlu0 %776
  %v778 = vsel %vm97, %v756, 0.0
  %779 = vadd.xlane.f32.xlu0 %v778
  %v780 = vpop.xlane.xlu0 %779
  %v781 = vld [vmem:[#allocation3] sm:$0x1]
  %s782 = vtos %v781
  %v783 = vstv %s782
  %v784 = vadd.f32 %v759, %v783
  %v785 = vadd.f32 %v762, %v783
  %v786 = vadd.f32 %v765, %v783
  %v787 = vadd.f32 %v768, %v783
  %v788 = vadd.f32 %v771, %v783
  %v789 = vadd.f32 %v774, %v783
  %v790 = vadd.f32 %v777, %v783
  %v791 = vadd.f32 %v780, %v783
  %v792 = vxor.u32 %v784, 2147483648
  %v793 = vxor.u32 %v785, 2147483648
  %v794 = vxor.u32 %v786, 2147483648
  %v795 = vxor.u32 %v787, 2147483648
  %v796 = vxor.u32 %v788, 2147483648
  %v797 = vxor.u32 %v789, 2147483648
  %v798 = vxor.u32 %v790, 2147483648
  %v799 = vxor.u32 %v791, 2147483648
  %v800 = vmul.f32 %v792, 1.442695
  %v801 = vpow.pop %v800
  %v802 = vmul.f32 %v793, 1.442695
  %v803 = vpow.pop %v802
  %v804 = vmul.f32 %v794, 1.442695
  %v805 = vpow.pop %v804
  %v806 = vmul.f32 %v795, 1.442695
  %v807 = vpow.pop %v806
  %v808 = vmul.f32 %v796, 1.442695
  %v809 = vpow.pop %v808
  %v810 = vmul.f32 %v797, 1.442695
  %v811 = vpow.pop %v810
  %v812 = vmul.f32 %v798, 1.442695
  %v813 = vpow.pop %v812
  %v814 = vmul.f32 %v799, 1.442695
  %v815 = vpow.pop %v814
  %v816 = vadd.f32 %v801, 1.0
  %v817 = vadd.f32 %v803, 1.0
  %v818 = vadd.f32 %v805, 1.0
  %v819 = vadd.f32 %v807, 1.0
  %v820 = vadd.f32 %v809, 1.0
  %v821 = vadd.f32 %v811, 1.0
  %v822 = vadd.f32 %v813, 1.0
  %v823 = vadd.f32 %v815, 1.0
  %v824 = vrcp.pop %v816
  %v825 = vmul.f32 1.0, %v824
  %v826 = vrcp.pop %v817
  %v827 = vmul.f32 1.0, %v826
  %v828 = vrcp.pop %v818
  %v829 = vmul.f32 1.0, %v828
  %v830 = vrcp.pop %v819
  %v831 = vmul.f32 1.0, %v830
  %v832 = vrcp.pop %v820
  %v833 = vmul.f32 1.0, %v832
  %v834 = vrcp.pop %v821
  %v835 = vmul.f32 1.0, %v834
  %v836 = vrcp.pop %v822
  %v837 = vmul.f32 1.0, %v836
  %v838 = vrcp.pop %v823
  %v839 = vmul.f32 1.0, %v838
  %v840 = vadd.f32 %v727, %v825
  %v841 = vadd.f32 %v729, %v827
  %v842 = vadd.f32 %v731, %v829
  %v843 = vadd.f32 %v733, %v831
  %v844 = vadd.f32 %v735, %v833
  %v845 = vadd.f32 %v737, %v835
  %v846 = vadd.f32 %v739, %v837
  %v847 = vadd.f32 %v741, %v839
  %v848 = vmax.f32 %v840, 1e-12
  %v849 = vmax.f32 %v841, 1e-12
  %v850 = vmax.f32 %v842, 1e-12
  %v851 = vmax.f32 %v843, 1e-12
  %v852 = vmax.f32 %v844, 1e-12
  %v853 = vmax.f32 %v845, 1e-12
  %v854 = vmax.f32 %v846, 1e-12
  %v855 = vmax.f32 %v847, 1e-12
  %v856 = vrcp.pop %v848
  %v857 = vrcp.pop %v849
  %v858 = vrcp.pop %v850
  %v859 = vrcp.pop %v851
  %v860 = vrcp.pop %v852
  %v861 = vrcp.pop %v853
  %v862 = vrcp.pop %v854
  %v863 = vrcp.pop %v855
  %v864 = vmul.f32 %v727, %v499
  %v865 = vmul.f32 %v729, %v500
  %v866 = vmul.f32 %v731, %v501
  %v867 = vmul.f32 %v733, %v502
  %v868 = vmul.f32 %v735, %v503
  %v869 = vmul.f32 %v737, %v504
  %v870 = vmul.f32 %v739, %v505
  %v871 = vmul.f32 %v741, %v506
  %v872 = vmul.f32 %v825, %v636
  %v873 = vmul.f32 %v827, %v637
  %v874 = vmul.f32 %v829, %v638
  %v875 = vmul.f32 %v831, %v639
  %v876 = vmul.f32 %v833, %v640
  %v877 = vmul.f32 %v835, %v641
  %v878 = vmul.f32 %v837, %v642
  %v879 = vmul.f32 %v839, %v643
  %v880 = vadd.f32 %v864, %v872
  %v881 = vadd.f32 %v865, %v873
  %v882 = vadd.f32 %v866, %v874
  %v883 = vadd.f32 %v867, %v875
  %v884 = vadd.f32 %v868, %v876
  %v885 = vadd.f32 %v869, %v877
  %v886 = vadd.f32 %v870, %v878
  %v887 = vadd.f32 %v871, %v879
  %v888 = vmul.f32 %v880, %v856
  %v889 = vmul.f32 %v881, %v857
  %v890 = vmul.f32 %v882, %v858
  %v891 = vmul.f32 %v883, %v859
  %v892 = vmul.f32 %v884, %v860
  %v893 = vmul.f32 %v885, %v861
  %v894 = vmul.f32 %v886, %v862
  %v895 = vmul.f32 %v887, %v863
  %v896 = vld [vmem:[%s6] sm:$0xff]
  %v897 = vld [vmem:[%s6 + $0x8] sm:$0xff]
  %v898 = vld [vmem:[%s6 + $0x10] sm:$0xff]
  %v899 = vld [vmem:[%s6 + $0x18] sm:$0xff]
  %v900 = vld [vmem:[%s6 + $0x20] sm:$0xff]
  %v901 = vld [vmem:[%s6 + $0x28] sm:$0xff]
  %v902 = vld [vmem:[%s6 + $0x30] sm:$0xff]
  %v903 = vld [vmem:[%s6 + $0x38] sm:$0xff]
  %v905 = vsel %vm97, %v888, 0
  %v908 = vsel %vm97, %v889, 0
  %v911 = vsel %vm97, %v890, 0
  %v914 = vsel %vm97, %v891, 0
  %v917 = vsel %vm97, %v892, 0
  %v920 = vsel %vm97, %v893, 0
  %v923 = vsel %vm97, %v894, 0
  %v926 = vsel %vm97, %v895, 0
  %928 = vmatprep.subr.mxu0 0.0
  %929 = vmatpush1.msra.mxu0 %v896
  %930 = vmatprep.subr.mxu0 0.0
  %931 = vmatpush1.msra.mxu0 %v897
  %932 = vmatprep.subr.mxu0 0.0
  %933 = vmatpush1.msra.mxu0 %v898
  %934 = vmatprep.subr.mxu0 0.0
  %935 = vmatpush1.msra.mxu0 %v899
  %936 = vmatprep.subr.mxu0 0.0
  %937 = vmatpush1.msra.mxu0 %v900
  %938 = vmatprep.subr.mxu0 0.0
  %939 = vmatpush1.msra.mxu0 %v901
  %940 = vmatprep.subr.mxu0 0.0
  %941 = vmatpush1.msra.mxu0 %v902
  %942 = vmatprep.subr.mxu0 0.0
  %943 = vmatpush1.msra.mxu0 %v903
  %944 = vmatprep.subr.mxu0 0.0
  %945 = vmatpush1.msra.mxu0 0.0
  %946 = vmatprep.subr.mxu0 0.0
  %947 = vmatpush1.msra.mxu0 0.0
  %948 = vmatprep.subr.mxu0 0.0
  %949 = vmatpush1.msra.mxu0 0.0
  %950 = vmatprep.subr.mxu0 0.0
  %951 = vmatpush1.msra.mxu0 0.0
  %952 = vmatprep.subr.mxu0 0.0
  %953 = vmatpush1.msra.mxu0 0.0
  %954 = vmatprep.subr.mxu0 0.0
  %955 = vmatpush1.msra.mxu0 0.0
  %956 = vmatprep.subr.mxu0 0.0
  %957 = vmatpush1.msra.mxu0 0.0
  %958 = vmatprep.subr.mxu0 0.0
  %959 = vmatpush1.msra.mxu0 0.0
  %960 = vmatprep.subr.mxu0 0.0
  %961 = vmatpush1.msra.mxu0 0.0
  %962 = vmatprep.subr.mxu0 0.0
  %963 = vmatpush1.msra.mxu0 0.0
  %964 = vmatprep.subr.mxu0 0.0
  %965 = vmatpush1.msra.mxu0 0.0
  %966 = vmatprep.subr.mxu0 0.0
  %967 = vmatpush1.msra.mxu0 0.0
  %968 = vmatprep.subr.mxu0 0.0
  %969 = vmatpush1.msra.mxu0 0.0
  %970 = vmatprep.subr.mxu0 0.0
  %971 = vmatpush1.msra.mxu0 0.0
  %972 = vmatprep.subr.mxu0 0.0
  %973 = vmatpush1.msra.mxu0 0.0
  %974 = vmatprep.subr.mxu0 0.0
  %975 = vmatpush1.msra.mxu0 0.0
  %976 = vmatprep.subr.mxu0 0.0
  %977 = vmatpush1.msra.mxu0 0.0
  %978 = vmatprep.subr.mxu0 0.0
  %979 = vmatpush1.msra.mxu0 0.0
  %980 = vmatprep.subr.mxu0 0.0
  %981 = vmatpush1.msra.mxu0 0.0
  %982 = vmatprep.subr.mxu0 0.0
  %983 = vmatpush1.msra.mxu0 0.0
  %984 = vmatprep.subr.mxu0 0.0
  %985 = vmatpush1.msra.mxu0 0.0
  %986 = vmatprep.subr.mxu0 0.0
  %987 = vmatpush1.msra.mxu0 0.0
  %988 = vmatprep.subr.mxu0 0.0
  %989 = vmatpush1.msra.mxu0 0.0
  %990 = vmatprep.subr.mxu0 0.0
  %991 = vmatpush1.msra.mxu0 0.0
  %992 = vmatprep.mubr.f32.mxu0 0.0
  %993 = vmatmul.mubr.f32.gmra.mrb[0].mxu0 %v905
  %v994 = vpop.f32.mrb[0].mxu0
  %v995 = vadd.f32 0.0, %v994
  %v996 = vpop.f32.mrb[0].mxu0
  %997 = vmatprep.mubr.f32.mxu0 0.0
  %998 = vmatmul.mubr.f32.gmra.mrb[0].mxu0 %v908
  %v999 = vpop.f32.mrb[0].mxu0
  %v1000 = vadd.f32 0.0, %v999
  %v1001 = vpop.f32.mrb[0].mxu0
  %1002 = vmatprep.mubr.f32.mxu0 0.0
  %1003 = vmatmul.mubr.f32.gmra.mrb[0].mxu0 %v911
  %v1004 = vpop.f32.mrb[0].mxu0
  %v1005 = vadd.f32 0.0, %v1004
  %v1006 = vpop.f32.mrb[0].mxu0
  %1007 = vmatprep.mubr.f32.mxu0 0.0
  %1008 = vmatmul.mubr.f32.gmra.mrb[0].mxu0 %v914
  %v1009 = vpop.f32.mrb[0].mxu0
  %v1010 = vadd.f32 0.0, %v1009
  %v1011 = vpop.f32.mrb[0].mxu0
  %1012 = vmatprep.mubr.f32.mxu0 0.0
  %1013 = vmatmul.mubr.f32.gmra.mrb[0].mxu0 %v917
  %v1014 = vpop.f32.mrb[0].mxu0
  %v1015 = vadd.f32 0.0, %v1014
  %v1016 = vpop.f32.mrb[0].mxu0
  %1017 = vmatprep.mubr.f32.mxu0 0.0
  %1018 = vmatmul.mubr.f32.gmra.mrb[0].mxu0 %v920
  %v1019 = vpop.f32.mrb[0].mxu0
  %v1020 = vadd.f32 0.0, %v1019
  %v1021 = vpop.f32.mrb[0].mxu0
  %1022 = vmatprep.mubr.f32.mxu0 0.0
  %1023 = vmatmul.mubr.f32.gmra.mrb[0].mxu0 %v923
  %v1024 = vpop.f32.mrb[0].mxu0
  %v1025 = vadd.f32 0.0, %v1024
  %v1026 = vpop.f32.mrb[0].mxu0
  %1027 = vmatprep.mubr.f32.mxu0 0.0
  %1028 = vmatmul.mubr.f32.gmra.mrb[0].mxu0 %v926
  %v1029 = vpop.f32.mrb[0].mxu0
  %v1030 = vadd.f32 0.0, %v1029
  %v1031 = vpop.f32.mrb[0].mxu0
  %1032 = vdwg.mxu0
  %v1033 = vld [vmem:[%s7] sm:$0x1]
  %v1035 = vlaneseq
  %v1036 = vshrl.u32 %v1035, 7
  %v1037 = vsub.s32 0, %v1036
  %v1038 = vrot.slane %v1033, %v1037
  %1040 = vmatprep.subr.mxu0 0.0
  %1041 = vmatpush1.msra.mxu0 %v995
  %1042 = vmatprep.subr.mxu0 0.0
  %1043 = vmatpush1.msra.mxu0 %v1000
  %1044 = vmatprep.subr.mxu0 0.0
  %1045 = vmatpush1.msra.mxu0 %v1005
  %1046 = vmatprep.subr.mxu0 0.0
  %1047 = vmatpush1.msra.mxu0 %v1010
  %1048 = vmatprep.subr.mxu0 0.0
  %1049 = vmatpush1.msra.mxu0 %v1015
  %1050 = vmatprep.subr.mxu0 0.0
  %1051 = vmatpush1.msra.mxu0 %v1020
  %1052 = vmatprep.subr.mxu0 0.0
  %1053 = vmatpush1.msra.mxu0 %v1025
  %1054 = vmatprep.subr.mxu0 0.0
  %1055 = vmatpush1.msra.mxu0 %v1030
  %1056 = vmatprep.subr.mxu0 0.0
  %1057 = vmatpush1.msra.mxu0 0.0
  %1058 = vmatprep.subr.mxu0 0.0
  %1059 = vmatpush1.msra.mxu0 0.0
  %1060 = vmatprep.subr.mxu0 0.0
  %1061 = vmatpush1.msra.mxu0 0.0
  %1062 = vmatprep.subr.mxu0 0.0
  %1063 = vmatpush1.msra.mxu0 0.0
  %1064 = vmatprep.subr.mxu0 0.0
  %1065 = vmatpush1.msra.mxu0 0.0
  %1066 = vmatprep.subr.mxu0 0.0
  %1067 = vmatpush1.msra.mxu0 0.0
  %1068 = vmatprep.subr.mxu0 0.0
  %1069 = vmatpush1.msra.mxu0 0.0
  %1070 = vmatprep.subr.mxu0 0.0
  %1071 = vmatpush1.msra.mxu0 0.0
  %1072 = vmatprep.subr.mxu0 0.0
  %1073 = vmatpush1.msra.mxu0 0.0
  %1074 = vmatprep.subr.mxu0 0.0
  %1075 = vmatpush1.msra.mxu0 0.0
  %1076 = vmatprep.subr.mxu0 0.0
  %1077 = vmatpush1.msra.mxu0 0.0
  %1078 = vmatprep.subr.mxu0 0.0
  %1079 = vmatpush1.msra.mxu0 0.0
  %1080 = vmatprep.subr.mxu0 0.0
  %1081 = vmatpush1.msra.mxu0 0.0
  %1082 = vmatprep.subr.mxu0 0.0
  %1083 = vmatpush1.msra.mxu0 0.0
  %1084 = vmatprep.subr.mxu0 0.0
  %1085 = vmatpush1.msra.mxu0 0.0
  %1086 = vmatprep.subr.mxu0 0.0
  %1087 = vmatpush1.msra.mxu0 0.0
  %1088 = vmatprep.subr.mxu0 0.0
  %1089 = vmatpush1.msra.mxu0 0.0
  %1090 = vmatprep.subr.mxu0 0.0
  %1091 = vmatpush1.msra.mxu0 0.0
  %1092 = vmatprep.subr.mxu0 0.0
  %1093 = vmatpush1.msra.mxu0 0.0
  %1094 = vmatprep.subr.mxu0 0.0
  %1095 = vmatpush1.msra.mxu0 0.0
  %1096 = vmatprep.subr.mxu0 0.0
  %1097 = vmatpush1.msra.mxu0 0.0
  %1098 = vmatprep.subr.mxu0 0.0
  %1099 = vmatpush1.msra.mxu0 0.0
  %1100 = vmatprep.subr.mxu0 0.0
  %1101 = vmatpush1.msra.mxu0 0.0
  %1102 = vmatprep.subr.mxu0 0.0
  %1103 = vmatpush1.msra.mxu0 0.0
  %1104 = vmatprep.mubr.f32.mxu0 0.0
  %1105 = vmatmul.mubr.f32.gmra.mrb[0].mxu0 %v371
  %v1106 = vpop.f32.mrb[0].mxu0
  %v1107 = vadd.f32 %v1038, %v1106
  %v1108 = vpop.f32.mrb[0].mxu0
  %1109 = vmatprep.mubr.f32.mxu0 0.0
  %1110 = vmatmul.mubr.f32.gmra.mrb[0].mxu0 %v374
  %v1111 = vpop.f32.mrb[0].mxu0
  %v1112 = vadd.f32 %v1038, %v1111
  %v1113 = vpop.f32.mrb[0].mxu0
  %1114 = vmatprep.mubr.f32.mxu0 0.0
  %1115 = vmatmul.mubr.f32.gmra.mrb[0].mxu0 %v377
  %v1116 = vpop.f32.mrb[0].mxu0
  %v1117 = vadd.f32 %v1038, %v1116
  %v1118 = vpop.f32.mrb[0].mxu0
  %1119 = vmatprep.mubr.f32.mxu0 0.0
  %1120 = vmatmul.mubr.f32.gmra.mrb[0].mxu0 %v380
  %v1121 = vpop.f32.mrb[0].mxu0
  %v1122 = vadd.f32 %v1038, %v1121
  %v1123 = vpop.f32.mrb[0].mxu0
  %1124 = vmatprep.mubr.f32.mxu0 0.0
  %1125 = vmatmul.mubr.f32.gmra.mrb[0].mxu0 %v383
  %v1126 = vpop.f32.mrb[0].mxu0
  %v1127 = vadd.f32 %v1038, %v1126
  %v1128 = vpop.f32.mrb[0].mxu0
  %1129 = vmatprep.mubr.f32.mxu0 0.0
  %1130 = vmatmul.mubr.f32.gmra.mrb[0].mxu0 %v386
  %v1131 = vpop.f32.mrb[0].mxu0
  %v1132 = vadd.f32 %v1038, %v1131
  %v1133 = vpop.f32.mrb[0].mxu0
  %1134 = vmatprep.mubr.f32.mxu0 0.0
  %1135 = vmatmul.mubr.f32.gmra.mrb[0].mxu0 %v389
  %v1136 = vpop.f32.mrb[0].mxu0
  %v1137 = vadd.f32 %v1038, %v1136
  %v1138 = vpop.f32.mrb[0].mxu0
  %1139 = vmatprep.mubr.f32.mxu0 0.0
  %1140 = vmatmul.mubr.f32.gmra.mrb[0].mxu0 %v392
  %v1141 = vpop.f32.mrb[0].mxu0
  %v1142 = vadd.f32 %v1038, %v1141
  %v1143 = vpop.f32.mrb[0].mxu0
  %1144 = vdwg.mxu0
  %1145 = vmatprep.subr.mxu0 0.0
  %1146 = vmatpush1.msra.mxu0 %v995
  %1147 = vmatprep.subr.mxu0 0.0
  %1148 = vmatpush1.msra.mxu0 %v1000
  %1149 = vmatprep.subr.mxu0 0.0
  %1150 = vmatpush1.msra.mxu0 %v1005
  %1151 = vmatprep.subr.mxu0 0.0
  %1152 = vmatpush1.msra.mxu0 %v1010
  %1153 = vmatprep.subr.mxu0 0.0
  %1154 = vmatpush1.msra.mxu0 %v1015
  %1155 = vmatprep.subr.mxu0 0.0
  %1156 = vmatpush1.msra.mxu0 %v1020
  %1157 = vmatprep.subr.mxu0 0.0
  %1158 = vmatpush1.msra.mxu0 %v1025
  %1159 = vmatprep.subr.mxu0 0.0
  %1160 = vmatpush1.msra.mxu0 %v1030
  %1161 = vmatprep.subr.mxu0 0.0
  %1162 = vmatpush1.msra.mxu0 0.0
  %1163 = vmatprep.subr.mxu0 0.0
  %1164 = vmatpush1.msra.mxu0 0.0
  %1165 = vmatprep.subr.mxu0 0.0
  %1166 = vmatpush1.msra.mxu0 0.0
  %1167 = vmatprep.subr.mxu0 0.0
  %1168 = vmatpush1.msra.mxu0 0.0
  %1169 = vmatprep.subr.mxu0 0.0
  %1170 = vmatpush1.msra.mxu0 0.0
  %1171 = vmatprep.subr.mxu0 0.0
  %1172 = vmatpush1.msra.mxu0 0.0
  %1173 = vmatprep.subr.mxu0 0.0
  %1174 = vmatpush1.msra.mxu0 0.0
  %1175 = vmatprep.subr.mxu0 0.0
  %1176 = vmatpush1.msra.mxu0 0.0
  %1177 = vmatprep.subr.mxu0 0.0
  %1178 = vmatpush1.msra.mxu0 0.0
  %1179 = vmatprep.subr.mxu0 0.0
  %1180 = vmatpush1.msra.mxu0 0.0
  %1181 = vmatprep.subr.mxu0 0.0
  %1182 = vmatpush1.msra.mxu0 0.0
  %1183 = vmatprep.subr.mxu0 0.0
  %1184 = vmatpush1.msra.mxu0 0.0
  %1185 = vmatprep.subr.mxu0 0.0
  %1186 = vmatpush1.msra.mxu0 0.0
  %1187 = vmatprep.subr.mxu0 0.0
  %1188 = vmatpush1.msra.mxu0 0.0
  %1189 = vmatprep.subr.mxu0 0.0
  %1190 = vmatpush1.msra.mxu0 0.0
  %1191 = vmatprep.subr.mxu0 0.0
  %1192 = vmatpush1.msra.mxu0 0.0
  %1193 = vmatprep.subr.mxu0 0.0
  %1194 = vmatpush1.msra.mxu0 0.0
  %1195 = vmatprep.subr.mxu0 0.0
  %1196 = vmatpush1.msra.mxu0 0.0
  %1197 = vmatprep.subr.mxu0 0.0
  %1198 = vmatpush1.msra.mxu0 0.0
  %1199 = vmatprep.subr.mxu0 0.0
  %1200 = vmatpush1.msra.mxu0 0.0
  %1201 = vmatprep.subr.mxu0 0.0
  %1202 = vmatpush1.msra.mxu0 0.0
  %1203 = vmatprep.subr.mxu0 0.0
  %1204 = vmatpush1.msra.mxu0 0.0
  %1205 = vmatprep.subr.mxu0 0.0
  %1206 = vmatpush1.msra.mxu0 0.0
  %1207 = vmatprep.subr.mxu0 0.0
  %1208 = vmatpush1.msra.mxu0 0.0
  %1209 = vmatprep.mubr.f32.mxu0 0.0
  %1210 = vmatmul.mubr.f32.gmra.mrb[0].mxu0 %v508
  %v1211 = vpop.f32.mrb[0].mxu0
  %v1212 = vadd.f32 %v1038, %v1211
  %v1213 = vpop.f32.mrb[0].mxu0
  %1214 = vmatprep.mubr.f32.mxu0 0.0
  %1215 = vmatmul.mubr.f32.gmra.mrb[0].mxu0 %v511
  %v1216 = vpop.f32.mrb[0].mxu0
  %v1217 = vadd.f32 %v1038, %v1216
  %v1218 = vpop.f32.mrb[0].mxu0
  %1219 = vmatprep.mubr.f32.mxu0 0.0
  %1220 = vmatmul.mubr.f32.gmra.mrb[0].mxu0 %v514
  %v1221 = vpop.f32.mrb[0].mxu0
  %v1222 = vadd.f32 %v1038, %v1221
  %v1223 = vpop.f32.mrb[0].mxu0
  %1224 = vmatprep.mubr.f32.mxu0 0.0
  %1225 = vmatmul.mubr.f32.gmra.mrb[0].mxu0 %v517
  %v1226 = vpop.f32.mrb[0].mxu0
  %v1227 = vadd.f32 %v1038, %v1226
  %v1228 = vpop.f32.mrb[0].mxu0
  %1229 = vmatprep.mubr.f32.mxu0 0.0
  %1230 = vmatmul.mubr.f32.gmra.mrb[0].mxu0 %v520
  %v1231 = vpop.f32.mrb[0].mxu0
  %v1232 = vadd.f32 %v1038, %v1231
  %v1233 = vpop.f32.mrb[0].mxu0
  %1234 = vmatprep.mubr.f32.mxu0 0.0
  %1235 = vmatmul.mubr.f32.gmra.mrb[0].mxu0 %v523
  %v1236 = vpop.f32.mrb[0].mxu0
  %v1237 = vadd.f32 %v1038, %v1236
  %v1238 = vpop.f32.mrb[0].mxu0
  %1239 = vmatprep.mubr.f32.mxu0 0.0
  %1240 = vmatmul.mubr.f32.gmra.mrb[0].mxu0 %v526
  %v1241 = vpop.f32.mrb[0].mxu0
  %v1242 = vadd.f32 %v1038, %v1241
  %v1243 = vpop.f32.mrb[0].mxu0
  %1244 = vmatprep.mubr.f32.mxu0 0.0
  %1245 = vmatmul.mubr.f32.gmra.mrb[0].mxu0 %v529
  %v1246 = vpop.f32.mrb[0].mxu0
  %v1247 = vadd.f32 %v1038, %v1246
  %v1248 = vpop.f32.mrb[0].mxu0
  %1249 = vdwg.mxu0
  %v1250 = vld [vmem:[%s12] sm:$0x1]
  %v1252 = vlaneseq
  %v1253 = vshrl.u32 %v1252, 7
  %v1254 = vsub.s32 0, %v1253
  %v1255 = vrot.slane %v1250, %v1254
  %v1257 = vmul.f32 %v1107, %v1255
  %v1258 = vmul.f32 %v1112, %v1255
  %v1259 = vmul.f32 %v1117, %v1255
  %v1260 = vmul.f32 %v1122, %v1255
  %v1261 = vmul.f32 %v1127, %v1255
  %v1262 = vmul.f32 %v1132, %v1255
  %v1263 = vmul.f32 %v1137, %v1255
  %v1264 = vmul.f32 %v1142, %v1255
  %vm1265 = vcmask 130048
  %v1266 = vsel %vm1265, %v1257, 0.0
  %1267 = vadd.xlane.f32.xlu0 %v1266
  %v1268 = vpop.xlane.xlu0 %1267
  %v1269 = vsel %vm1265, %v1258, 0.0
  %1270 = vadd.xlane.f32.xlu0 %v1269
  %v1271 = vpop.xlane.xlu0 %1270
  %v1272 = vsel %vm1265, %v1259, 0.0
  %1273 = vadd.xlane.f32.xlu0 %v1272
  %v1274 = vpop.xlane.xlu0 %1273
  %v1275 = vsel %vm1265, %v1260, 0.0
  %1276 = vadd.xlane.f32.xlu0 %v1275
  %v1277 = vpop.xlane.xlu0 %1276
  %v1278 = vsel %vm1265, %v1261, 0.0
  %1279 = vadd.xlane.f32.xlu0 %v1278
  %v1280 = vpop.xlane.xlu0 %1279
  %v1281 = vsel %vm1265, %v1262, 0.0
  %1282 = vadd.xlane.f32.xlu0 %v1281
  %v1283 = vpop.xlane.xlu0 %1282
  %v1284 = vsel %vm1265, %v1263, 0.0
  %1285 = vadd.xlane.f32.xlu0 %v1284
  %v1286 = vpop.xlane.xlu0 %1285
  %v1287 = vsel %vm1265, %v1264, 0.0
  %1288 = vadd.xlane.f32.xlu0 %v1287
  %v1289 = vpop.xlane.xlu0 %1288
  %v1290 = vld [vmem:[#allocation4] sm:$0x1]
  %s1291 = vtos %v1290
  %v1292 = vstv %s1291
  %v1293 = vadd.f32 %v1268, %v1292
  %v1294 = vadd.f32 %v1271, %v1292
  %v1295 = vadd.f32 %v1274, %v1292
  %v1296 = vadd.f32 %v1277, %v1292
  %v1297 = vadd.f32 %v1280, %v1292
  %v1298 = vadd.f32 %v1283, %v1292
  %v1299 = vadd.f32 %v1286, %v1292
  %v1300 = vadd.f32 %v1289, %v1292
  %v1301 = vxor.u32 %v1293, 2147483648
  %v1302 = vxor.u32 %v1294, 2147483648
  %v1303 = vxor.u32 %v1295, 2147483648
  %v1304 = vxor.u32 %v1296, 2147483648
  %v1305 = vxor.u32 %v1297, 2147483648
  %v1306 = vxor.u32 %v1298, 2147483648
  %v1307 = vxor.u32 %v1299, 2147483648
  %v1308 = vxor.u32 %v1300, 2147483648
  %v1309 = vmul.f32 %v1301, 1.442695
  %v1310 = vpow.pop %v1309
  %v1311 = vmul.f32 %v1302, 1.442695
  %v1312 = vpow.pop %v1311
  %v1313 = vmul.f32 %v1303, 1.442695
  %v1314 = vpow.pop %v1313
  %v1315 = vmul.f32 %v1304, 1.442695
  %v1316 = vpow.pop %v1315
  %v1317 = vmul.f32 %v1305, 1.442695
  %v1318 = vpow.pop %v1317
  %v1319 = vmul.f32 %v1306, 1.442695
  %v1320 = vpow.pop %v1319
  %v1321 = vmul.f32 %v1307, 1.442695
  %v1322 = vpow.pop %v1321
  %v1323 = vmul.f32 %v1308, 1.442695
  %v1324 = vpow.pop %v1323
  %v1325 = vadd.f32 %v1310, 1.0
  %v1326 = vadd.f32 %v1312, 1.0
  %v1327 = vadd.f32 %v1314, 1.0
  %v1328 = vadd.f32 %v1316, 1.0
  %v1329 = vadd.f32 %v1318, 1.0
  %v1330 = vadd.f32 %v1320, 1.0
  %v1331 = vadd.f32 %v1322, 1.0
  %v1332 = vadd.f32 %v1324, 1.0
  %v1333 = vrcp.pop %v1325
  %v1334 = vmul.f32 1.0, %v1333
  %v1335 = vrcp.pop %v1326
  %v1336 = vmul.f32 1.0, %v1335
  %v1337 = vrcp.pop %v1327
  %v1338 = vmul.f32 1.0, %v1337
  %v1339 = vrcp.pop %v1328
  %v1340 = vmul.f32 1.0, %v1339
  %v1341 = vrcp.pop %v1329
  %v1342 = vmul.f32 1.0, %v1341
  %v1343 = vrcp.pop %v1330
  %v1344 = vmul.f32 1.0, %v1343
  %v1345 = vrcp.pop %v1331
  %v1346 = vmul.f32 1.0, %v1345
  %v1347 = vrcp.pop %v1332
  %v1348 = vmul.f32 1.0, %v1347
  %v1349 = vld [vmem:[%s14] sm:$0x1]
  %v1351 = vlaneseq
  %v1352 = vshrl.u32 %v1351, 7
  %v1353 = vsub.s32 0, %v1352
  %v1354 = vrot.slane %v1349, %v1353
  %v1356 = vmul.f32 %v1212, %v1354
  %v1357 = vmul.f32 %v1217, %v1354
  %v1358 = vmul.f32 %v1222, %v1354
  %v1359 = vmul.f32 %v1227, %v1354
  %v1360 = vmul.f32 %v1232, %v1354
  %v1361 = vmul.f32 %v1237, %v1354
  %v1362 = vmul.f32 %v1242, %v1354
  %v1363 = vmul.f32 %v1247, %v1354
  %v1364 = vsel %vm1265, %v1356, 0.0
  %1365 = vadd.xlane.f32.xlu0 %v1364
  %v1366 = vpop.xlane.xlu0 %1365
  %v1367 = vsel %vm1265, %v1357, 0.0
  %1368 = vadd.xlane.f32.xlu0 %v1367
  %v1369 = vpop.xlane.xlu0 %1368
  %v1370 = vsel %vm1265, %v1358, 0.0
  %1371 = vadd.xlane.f32.xlu0 %v1370
  %v1372 = vpop.xlane.xlu0 %1371
  %v1373 = vsel %vm1265, %v1359, 0.0
  %1374 = vadd.xlane.f32.xlu0 %v1373
  %v1375 = vpop.xlane.xlu0 %1374
  %v1376 = vsel %vm1265, %v1360, 0.0
  %1377 = vadd.xlane.f32.xlu0 %v1376
  %v1378 = vpop.xlane.xlu0 %1377
  %v1379 = vsel %vm1265, %v1361, 0.0
  %1380 = vadd.xlane.f32.xlu0 %v1379
  %v1381 = vpop.xlane.xlu0 %1380
  %v1382 = vsel %vm1265, %v1362, 0.0
  %1383 = vadd.xlane.f32.xlu0 %v1382
  %v1384 = vpop.xlane.xlu0 %1383
  %v1385 = vsel %vm1265, %v1363, 0.0
  %1386 = vadd.xlane.f32.xlu0 %v1385
  %v1387 = vpop.xlane.xlu0 %1386
  %v1388 = vld [vmem:[#allocation5] sm:$0x1]
  %s1389 = vtos %v1388
  %v1390 = vstv %s1389
  %v1391 = vadd.f32 %v1366, %v1390
  %v1392 = vadd.f32 %v1369, %v1390
  %v1393 = vadd.f32 %v1372, %v1390
  %v1394 = vadd.f32 %v1375, %v1390
  %v1395 = vadd.f32 %v1378, %v1390
  %v1396 = vadd.f32 %v1381, %v1390
  %v1397 = vadd.f32 %v1384, %v1390
  %v1398 = vadd.f32 %v1387, %v1390
  %v1399 = vxor.u32 %v1391, 2147483648
  %v1400 = vxor.u32 %v1392, 2147483648
  %v1401 = vxor.u32 %v1393, 2147483648
  %v1402 = vxor.u32 %v1394, 2147483648
  %v1403 = vxor.u32 %v1395, 2147483648
  %v1404 = vxor.u32 %v1396, 2147483648
  %v1405 = vxor.u32 %v1397, 2147483648
  %v1406 = vxor.u32 %v1398, 2147483648
  %v1407 = vmul.f32 %v1399, 1.442695
  %v1408 = vpow.pop %v1407
  %v1409 = vmul.f32 %v1400, 1.442695
  %v1410 = vpow.pop %v1409
  %v1411 = vmul.f32 %v1401, 1.442695
  %v1412 = vpow.pop %v1411
  %v1413 = vmul.f32 %v1402, 1.442695
  %v1414 = vpow.pop %v1413
  %v1415 = vmul.f32 %v1403, 1.442695
  %v1416 = vpow.pop %v1415
  %v1417 = vmul.f32 %v1404, 1.442695
  %v1418 = vpow.pop %v1417
  %v1419 = vmul.f32 %v1405, 1.442695
  %v1420 = vpow.pop %v1419
  %v1421 = vmul.f32 %v1406, 1.442695
  %v1422 = vpow.pop %v1421
  %v1423 = vadd.f32 %v1408, 1.0
  %v1424 = vadd.f32 %v1410, 1.0
  %v1425 = vadd.f32 %v1412, 1.0
  %v1426 = vadd.f32 %v1414, 1.0
  %v1427 = vadd.f32 %v1416, 1.0
  %v1428 = vadd.f32 %v1418, 1.0
  %v1429 = vadd.f32 %v1420, 1.0
  %v1430 = vadd.f32 %v1422, 1.0
  %v1431 = vrcp.pop %v1423
  %v1432 = vmul.f32 1.0, %v1431
  %v1433 = vrcp.pop %v1424
  %v1434 = vmul.f32 1.0, %v1433
  %v1435 = vrcp.pop %v1425
  %v1436 = vmul.f32 1.0, %v1435
  %v1437 = vrcp.pop %v1426
  %v1438 = vmul.f32 1.0, %v1437
  %v1439 = vrcp.pop %v1427
  %v1440 = vmul.f32 1.0, %v1439
  %v1441 = vrcp.pop %v1428
  %v1442 = vmul.f32 1.0, %v1441
  %v1443 = vrcp.pop %v1429
  %v1444 = vmul.f32 1.0, %v1443
  %v1445 = vrcp.pop %v1430
  %v1446 = vmul.f32 1.0, %v1445
  %v1447 = vadd.f32 %v1334, %v1432
  %v1448 = vadd.f32 %v1336, %v1434
  %v1449 = vadd.f32 %v1338, %v1436
  %v1450 = vadd.f32 %v1340, %v1438
  %v1451 = vadd.f32 %v1342, %v1440
  %v1452 = vadd.f32 %v1344, %v1442
  %v1453 = vadd.f32 %v1346, %v1444
  %v1454 = vadd.f32 %v1348, %v1446
  %v1455 = vmax.f32 %v1447, 1e-12
  %v1456 = vmax.f32 %v1448, 1e-12
  %v1457 = vmax.f32 %v1449, 1e-12
  %v1458 = vmax.f32 %v1450, 1e-12
  %v1459 = vmax.f32 %v1451, 1e-12
  %v1460 = vmax.f32 %v1452, 1e-12
  %v1461 = vmax.f32 %v1453, 1e-12
  %v1462 = vmax.f32 %v1454, 1e-12
  %v1463 = vrcp.pop %v1455
  %v1464 = vrcp.pop %v1456
  %v1465 = vrcp.pop %v1457
  %v1466 = vrcp.pop %v1458
  %v1467 = vrcp.pop %v1459
  %v1468 = vrcp.pop %v1460
  %v1469 = vrcp.pop %v1461
  %v1470 = vrcp.pop %v1462
  %1471 = vst.msk [vmem:[%s17] sm:$0xff] %vm1265, %v1107
  %1472 = vst.msk [vmem:[%s17 + $0x8] sm:$0xff] %vm1265, %v1112
  %1473 = vst.msk [vmem:[%s17 + $0x10] sm:$0xff] %vm1265, %v1117
  %1474 = vst.msk [vmem:[%s17 + $0x18] sm:$0xff] %vm1265, %v1122
  %1475 = vst.msk [vmem:[%s17 + $0x20] sm:$0xff] %vm1265, %v1127
  %1476 = vst.msk [vmem:[%s17 + $0x28] sm:$0xff] %vm1265, %v1132
  %1477 = vst.msk [vmem:[%s17 + $0x30] sm:$0xff] %vm1265, %v1137
  %1478 = vst.msk [vmem:[%s17 + $0x38] sm:$0xff] %vm1265, %v1142
  %1479 = vst.msk [vmem:[%s18] sm:$0xff] %vm1265, %v1212
  %1480 = vst.msk [vmem:[%s18 + $0x8] sm:$0xff] %vm1265, %v1217
  %1481 = vst.msk [vmem:[%s18 + $0x10] sm:$0xff] %vm1265, %v1222
  %1482 = vst.msk [vmem:[%s18 + $0x18] sm:$0xff] %vm1265, %v1227
  %1483 = vst.msk [vmem:[%s18 + $0x20] sm:$0xff] %vm1265, %v1232
  %1484 = vst.msk [vmem:[%s18 + $0x28] sm:$0xff] %vm1265, %v1237
  %1485 = vst.msk [vmem:[%s18 + $0x30] sm:$0xff] %vm1265, %v1242
  %1486 = vst.msk [vmem:[%s18 + $0x38] sm:$0xff] %vm1265, %v1247
  %v1487 = vmul.f32 %v1334, %v1107
  %v1488 = vmul.f32 %v1336, %v1112
  %v1489 = vmul.f32 %v1338, %v1117
  %v1490 = vmul.f32 %v1340, %v1122
  %v1491 = vmul.f32 %v1342, %v1127
  %v1492 = vmul.f32 %v1344, %v1132
  %v1493 = vmul.f32 %v1346, %v1137
  %v1494 = vmul.f32 %v1348, %v1142
  %v1495 = vmul.f32 %v1432, %v1212
  %v1496 = vmul.f32 %v1434, %v1217
  %v1497 = vmul.f32 %v1436, %v1222
  %v1498 = vmul.f32 %v1438, %v1227
  %v1499 = vmul.f32 %v1440, %v1232
  %v1500 = vmul.f32 %v1442, %v1237
  %v1501 = vmul.f32 %v1444, %v1242
  %v1502 = vmul.f32 %v1446, %v1247
  %v1503 = vadd.f32 %v1487, %v1495
  %v1504 = vadd.f32 %v1488, %v1496
  %v1505 = vadd.f32 %v1489, %v1497
  %v1506 = vadd.f32 %v1490, %v1498
  %v1507 = vadd.f32 %v1491, %v1499
  %v1508 = vadd.f32 %v1492, %v1500
  %v1509 = vadd.f32 %v1493, %v1501
  %v1510 = vadd.f32 %v1494, %v1502
  %v1511 = vmul.f32 %v1503, %v1463
  %v1512 = vmul.f32 %v1504, %v1464
  %v1513 = vmul.f32 %v1505, %v1465
  %v1514 = vmul.f32 %v1506, %v1466
  %v1515 = vmul.f32 %v1507, %v1467
  %v1516 = vmul.f32 %v1508, %v1468
  %v1517 = vmul.f32 %v1509, %v1469
  %v1518 = vmul.f32 %v1510, %v1470
  %1519 = vst.msk [vmem:[%s16] sm:$0xff] %vm1265, %v1511
  %1520 = vst.msk [vmem:[%s16 + $0x8] sm:$0xff] %vm1265, %v1512
  %1521 = vst.msk [vmem:[%s16 + $0x10] sm:$0xff] %vm1265, %v1513
  %1522 = vst.msk [vmem:[%s16 + $0x18] sm:$0xff] %vm1265, %v1514
  %1523 = vst.msk [vmem:[%s16 + $0x20] sm:$0xff] %vm1265, %v1515
  %1524 = vst.msk [vmem:[%s16 + $0x28] sm:$0xff] %vm1265, %v1516
  %1525 = vst.msk [vmem:[%s16 + $0x30] sm:$0xff] %vm1265, %v1517
  %1526 = vst.msk [vmem:[%s16 + $0x38] sm:$0xff] %vm1265, %v1518
  // Predicated region
  $region66: #{dagcn_forward.1} parent=0 // pred_check
    _
  $region67: #{dagcn_forward.1} parent=0 // pred_check_branch
    %1528 = sbr.rel (0) target = $region69
  $region68: #{dagcn_forward.1} parent=0 // pred_region
    _
  $region69: #{dagcn_forward.1} parent=0 // pred_fallthru
    _
  // Predicated region
  $region70: #{dagcn_forward.1} parent=0 // pred_check
    _
  $region71: #{dagcn_forward.1} parent=0 // pred_check_branch
    %1530 = sbr.rel (0) target = $region73
  $region72: #{dagcn_forward.1} parent=0 // pred_region
    _
  $region73: #{dagcn_forward.1} parent=0 // pred_fallthru
    _
  // Predicated region
  $region74: #{dagcn_forward.1} parent=0 // pred_check
    _
  $region75: #{dagcn_forward.1} parent=0 // pred_check_branch
    %1532 = sbr.rel (0) target = $region77
  $region76: #{dagcn_forward.1} parent=0 // pred_region
    _
  $region77: #{dagcn_forward.1} parent=0 // pred_fallthru
    _
  // Predicated region
  $region78: #{dagcn_forward.1} parent=0 // pred_check
    _
  $region79: #{dagcn_forward.1} parent=0 // pred_check_branch
    %1534 = sbr.rel (0) target = $region81
  $region80: #{dagcn_forward.1} parent=0 // pred_region
    _
  $region81: #{dagcn_forward.1} parent=0 // pred_fallthru
    _
  // Predicated region
  $region82: #{dagcn_forward.1} parent=0 // pred_check
    _
  $region83: #{dagcn_forward.1} parent=0 // pred_check_branch
    %1536 = sbr.rel (0) target = $region85
  $region84: #{dagcn_forward.1} parent=0 // pred_region
    _
  $region85: #{dagcn_forward.1} parent=0 // pred_fallthru
    _
  // Predicated region
  $region86: #{dagcn_forward.1} parent=0 // pred_check
    _
  $region87: #{dagcn_forward.1} parent=0 // pred_check_branch
    %1538 = sbr.rel (0) target = $region89
  $region88: #{dagcn_forward.1} parent=0 // pred_region
    _
  $region89: #{dagcn_forward.1} parent=0 // pred_fallthru
    _

</llo_original>
